<compile_context>
chip_gen: v6e
topology: v6e:2x2x1
jax: 0.10.0
libtpu: 0.0.40
codegen_flags: <defaults>
</compile_context>

<pallas_src>
import functools

import jax
import jax.numpy as jnp
import numpy as np
from jax.experimental import pallas as pl
from jax.experimental.pallas import tpu as pltpu


def wave_block_kernel(x_ref, w0_ref, b0_ref, wfg_ref, bfg_ref, wc_ref, bc_ref,
                      out_ref, *, num_rates, seq_len, c_out):
    """One grid step = `bt` whole sequences, flattened to rows = bt*seq_len.

    x_ref   : (rows, C_in)           input activations (f32)
    w0_ref  : (C_in, C_out)          1x1 conv weight (bf16, transposed)
    b0_ref  : (1, C_out)             f32
    wfg_ref : (R, 3*C_out, 2*C_out)  fused dilated filter|gate weights (bf16)
    bfg_ref : (R, 1, 2*C_out)        f32
    wc_ref  : (R, C_out, C_out)      1x1 conv weights (bf16, transposed)
    bc_ref  : (R, 1, C_out)          f32
    out_ref : (rows, C_out)
    """
    rows = x_ref.shape[0]

    # convs[0]: 1x1 conv == matmul over channels (bf16 in, f32 accumulate).
    x = x_ref[...].astype(jnp.bfloat16)
    h = jnp.dot(x, w0_ref[...], preferred_element_type=jnp.float32) + b0_ref[...]
    res = h

    # Position of each row inside its own sequence (several sequences are
    # packed along the row axis).  Computed once, reused by every rate.
    pos = jax.lax.broadcasted_iota(jnp.int32, (rows, c_out), 0) % seq_len

    for i in range(num_rates):
        d = 2 ** i
        # Shifted copies via XLU rotate.  The mask zeroes both the true
        # zero-padding rows at sequence boundaries and any rows that rolled
        # across a packed-sequence boundary, so packing stays exact.
        h_m = jnp.where(pos >= d, pltpu.roll(h, d, axis=0), 0.0)          # h[l-d]
        h_p = jnp.where(pos < seq_len - d, pltpu.roll(h, rows - d, axis=0), 0.0)  # h[l+d]

        # Dilated filter+gate convs fused into one MXU pass per rate:
        # K = 3*C_out (taps), N = 2*C_out (filter | gate).
        h3 = jnp.concatenate([h_m, h, h_p], axis=-1).astype(jnp.bfloat16)
        fg = jnp.dot(h3, wfg_ref[i], preferred_element_type=jnp.float32) + bfg_ref[i]
        f = fg[:, :c_out]
        g = fg[:, c_out:]
        z = (jnp.tanh(f) * jax.nn.sigmoid(g)).astype(jnp.bfloat16)

        # convs[i+1]: 1x1 conv.
        h = jnp.dot(z, wc_ref[i], preferred_element_type=jnp.float32) + bc_ref[i]
        res = res + h

    out_ref[...] = res.astype(out_ref.dtype)


def _pick_batch_tile(B, L, target_rows=2048):
    """Pack whole sequences per grid step, keeping the row tile bounded."""
    bt = max(1, min(B, max(1, target_rows // L)))
    while B % bt != 0:
        bt -= 1
    if (bt * L) % 8 != 0:
        bt = B  # full-array block always satisfies the (8,128) block rule
    return bt


def wave_block_pallas(x_nlc, params, num_rates):
    """x_nlc: (B, L, C_in) float32. Returns (B, L, C_out) float32."""
    B, L, C_in = x_nlc.shape
    C_out = params["w0"].shape[0]
    R = num_rates
    d_max = 2 ** (num_rates - 1)
    assert L > d_max, "sequence must be longer than the largest dilation"

    # ---- weight prep (once): transpose + fuse + bf16 cast ------------------
    w0_t = jnp.transpose(params["w0"][:, :, 0]).astype(jnp.bfloat16)      # (C_in, C_out)
    b0_k = params["b0"][None, :].astype(jnp.float32)                      # (1, C_out)
    # dilated conv weights (R, out, in, 3) -> tap-major (in, out): (R, 3C, C).
    # Tap order [l-d, l, l+d] matches H3 = [h_m | h | h_p] in the kernel.
    wf_t = jnp.transpose(params["wf"], (0, 3, 2, 1)).reshape(R, 3 * C_out, C_out)
    wg_t = jnp.transpose(params["wg"], (0, 3, 2, 1)).reshape(R, 3 * C_out, C_out)
    wfg = jnp.concatenate([wf_t, wg_t], axis=-1).astype(jnp.bfloat16)     # (R, 3C, 2C)
    bfg = jnp.concatenate([params["bf"], params["bg"]],
                          axis=-1)[:, None, :].astype(jnp.float32)        # (R, 1, 2C)
    wc_t = jnp.transpose(params["wc"][:, :, :, 0], (0, 2, 1)).astype(jnp.bfloat16)  # (R, C, C)
    bc_k = params["bc"][:, None, :].astype(jnp.float32)                   # (R, 1, C)

    # ---- tiling: flatten packed sequences to a 2-D (rows, C) problem -------
    bt = _pick_batch_tile(B, L)
    TM = bt * L
    x2d = x_nlc.reshape(B * L, C_in)

    # Explicit scoped-VMEM budget: double-buffered IO + weights + intermediates.
    weight_bytes = ((C_in * C_out + R * 3 * C_out * 2 * C_out + R * C_out * C_out) * 2 * 2
                    + (C_out + R * 3 * C_out) * 4 * 2)
    io_bytes = 2 * TM * (C_in + C_out) * 4
    live_bytes = TM * 14 * C_out * 4
    vmem_limit = int(min(max(2 * (weight_bytes + io_bytes + live_bytes),
                             32 * 1024 * 1024),
                         64 * 1024 * 1024))

    kernel = functools.partial(wave_block_kernel,
                               num_rates=R, seq_len=L, c_out=C_out)

    out2d = pl.pallas_call(
        kernel,
        out_shape=jax.ShapeDtypeStruct((B * L, C_out), jnp.float32),
        grid_spec=pltpu.PrefetchScalarGridSpec(
            num_scalar_prefetch=0,
            grid=(B // bt,),
            in_specs=[
                pl.BlockSpec((TM, C_in), lambda b: (b, 0)),
                pl.BlockSpec((C_in, C_out), lambda b: (0, 0)),
                pl.BlockSpec((1, C_out), lambda b: (0, 0)),
                pl.BlockSpec((R, 3 * C_out, 2 * C_out), lambda b: (0, 0, 0)),
                pl.BlockSpec((R, 1, 2 * C_out), lambda b: (0, 0, 0)),
                pl.BlockSpec((R, C_out, C_out), lambda b: (0, 0, 0)),
                pl.BlockSpec((R, 1, C_out), lambda b: (0, 0, 0)),
            ],
            out_specs=pl.BlockSpec((TM, C_out), lambda b: (b, 0)),
        ),
        compiler_params=pltpu.CompilerParams(
            dimension_semantics=("parallel",),      # batch tiles are independent
            vmem_limit_bytes=vmem_limit),
    )(x2d, w0_t, b0_k, wfg, bfg, wc_t, bc_k)

    return out2d.reshape(B, L, C_out)


# -------- pure-JAX reference (PyTorch NCL semantics, f32 HIGHEST) -----------
def _conv1d_ncl(x, w, b, dilation=1, padding=0):
    y = jax.lax.conv_general_dilated(
        x, w, window_strides=(1,), padding=[(padding, padding)],
        rhs_dilation=(dilation,), dimension_numbers=("NCH", "OIH", "NCH"),
        precision=jax.lax.Precision.HIGHEST)
    return y + b[None, :, None]


def wave_block_ref(x_ncl, params, num_rates):
    h = _conv1d_ncl(x_ncl, params["w0"], params["b0"])
    res = h
    for i in range(num_rates):
        d = 2 ** i
        f = _conv1d_ncl(h, params["wf"][i], params["bf"][i], dilation=d, padding=d)
        g = _conv1d_ncl(h, params["wg"][i], params["bg"][i], dilation=d, padding=d)
        h = _conv1d_ncl(jnp.tanh(f) * jax.nn.sigmoid(g),
                        params["wc"][i], params["bc"][i])
        res = res + h
    return res


if __name__ == "__main__":
    B, C_in, C_out, L = 2, 8, 16, 32
    num_rates = 3

    key = jax.random.PRNGKey(0)
    ks = jax.random.split(key, 9)
    scale = 0.15  # ~ PyTorch Conv1d default init magnitude (1/sqrt(fan_in))
    params = {
        "w0": scale * jax.random.normal(ks[0], (C_out, C_in, 1), jnp.float32),
        "b0": scale * jax.random.normal(ks[1], (C_out,), jnp.float32),
        "wf": scale * jax.random.normal(ks[2], (num_rates, C_out, C_out, 3), jnp.float32),
        "bf": scale * jax.random.normal(ks[3], (num_rates, C_out), jnp.float32),
        "wg": scale * jax.random.normal(ks[4], (num_rates, C_out, C_out, 3), jnp.float32),
        "bg": scale * jax.random.normal(ks[5], (num_rates, C_out), jnp.float32),
        "wc": scale * jax.random.normal(ks[6], (num_rates, C_out, C_out, 1), jnp.float32),
        "bc": scale * jax.random.normal(ks[7], (num_rates, C_out), jnp.float32),
    }

    x_ncl = jax.random.normal(ks[8], (B, C_in, L), jnp.float32)   # PyTorch layout
    x_nlc = jnp.transpose(x_ncl, (0, 2, 1))                       # kernel layout

    out_nlc = wave_block_pallas(x_nlc, params, num_rates)
    out_nlc = jax.block_until_ready(out_nlc)
    out_ncl = jnp.transpose(out_nlc, (0, 2, 1))

    ref_ncl = wave_block_ref(x_ncl, params, num_rates)
    # Kernel uses bf16 MXU operands with f32 accumulation; reference is full f32
    # HIGHEST, so the tolerance is set for bf16-class arithmetic.
    np.testing.assert_allclose(np.asarray(out_ncl), np.asarray(ref_ncl),
                               rtol=2e-2, atol=2e-2)
    print("KERNEL_OK")
</pallas_src>

<mosaic_0001>
module attributes {stable_mosaic.version = 11 : i64} {
  func.func @wave_block_kernel(%arg0: i32, %arg1: memref<64x8xf32, #tpu.memory_space<vmem>>, %arg2: memref<8x16xbf16, #tpu.memory_space<vmem>>, %arg3: memref<1x16xf32, #tpu.memory_space<vmem>>, %arg4: memref<3x48x32xbf16, #tpu.memory_space<vmem>>, %arg5: memref<3x1x32xf32, #tpu.memory_space<vmem>>, %arg6: memref<3x16x16xbf16, #tpu.memory_space<vmem>>, %arg7: memref<3x1x16xf32, #tpu.memory_space<vmem>>, %arg8: memref<64x16xf32, #tpu.memory_space<vmem>>) attributes {dimension_semantics = [#tpu.dimension_semantics<parallel>], iteration_bounds = array<i64: 1>, scalar_prefetch = 0 : i64, scratch_operands = 0 : i64, tpu.core_type = #tpu.core_type<tc>, window_params = [{transform_indices = @transform_0, window_bounds = array<i64: 64, 8>}, {pipeline_mode = #tpu.pipeline_mode<synchronous>, transform_indices = @transform_1, window_bounds = array<i64: 8, 16>}, {pipeline_mode = #tpu.pipeline_mode<synchronous>, transform_indices = @transform_2, window_bounds = array<i64: 1, 16>}, {pipeline_mode = #tpu.pipeline_mode<synchronous>, transform_indices = @transform_3, window_bounds = array<i64: 3, 48, 32>}, {pipeline_mode = #tpu.pipeline_mode<synchronous>, transform_indices = @transform_4, window_bounds = array<i64: 3, 1, 32>}, {pipeline_mode = #tpu.pipeline_mode<synchronous>, transform_indices = @transform_5, window_bounds = array<i64: 3, 16, 16>}, {pipeline_mode = #tpu.pipeline_mode<synchronous>, transform_indices = @transform_6, window_bounds = array<i64: 3, 1, 16>}, {transform_indices = @transform_7, window_bounds = array<i64: 64, 16>}]} {
    %c0 = arith.constant 0 : index
    %c0_0 = arith.constant 0 : index
    %0 = vector.load %arg1[%c0, %c0_0] : memref<64x8xf32, #tpu.memory_space<vmem>>, vector<64x8xf32>
    %1 = arith.truncf %0 : vector<64x8xf32> to vector<64x8xbf16>
    %c0_1 = arith.constant 0 : index
    %c0_2 = arith.constant 0 : index
    %2 = vector.load %arg2[%c0_1, %c0_2] : memref<8x16xbf16, #tpu.memory_space<vmem>>, vector<8x16xbf16>
    %cst = arith.constant dense<0.000000e+00> : vector<64x16xf32>
    %3 = tpu.matmul %1, %2, %cst {dimension_numbers = #tpu.dot_dimension_numbers<[1], [0], [0], [1], [0, 0, 1, 1], [], []>} : vector<64x8xbf16>, vector<8x16xbf16>, vector<64x16xf32> -> vector<64x16xf32>
    %c0_3 = arith.constant 0 : index
    %c0_4 = arith.constant 0 : index
    %4 = vector.load %arg3[%c0_3, %c0_4] : memref<1x16xf32, #tpu.memory_space<vmem>>, vector<1x16xf32>
    %5 = vector.broadcast %4 : vector<1x16xf32> to vector<64x16xf32>
    %6 = arith.addf %3, %5 : vector<64x16xf32>
    %7 = tpu.iota {dimensions = array<i32: 0>} : vector<64x16xi32>
    %c32_i32 = arith.constant 32 : i32
    %c0_i32 = arith.constant 0 : i32
    %8 = arith.cmpi eq, %c32_i32, %c0_i32 : i32
    %c1_i32 = arith.constant 1 : i32
    %9 = arith.select %8, %c1_i32, %c32_i32 : i32
    %10 = vector.broadcast %9 : i32 to vector<64x16xi32>
    %11 = arith.remsi %7, %10 : vector<64x16xi32>
    %c0_i32_5 = arith.constant 0 : i32
    %12 = vector.broadcast %c0_i32_5 : i32 to vector<64x16xi32>
    %13 = arith.cmpi ne, %11, %12 : vector<64x16xi32>
    %c0_i32_6 = arith.constant 0 : i32
    %14 = vector.broadcast %c0_i32_6 : i32 to vector<64x16xi32>
    %15 = arith.cmpi slt, %11, %14 : vector<64x16xi32>
    %c0_i32_7 = arith.constant 0 : i32
    %16 = arith.cmpi slt, %9, %c0_i32_7 : i32
    %17 = vector.broadcast %16 : i1 to vector<64x16xi1>
    %18 = vector.broadcast %17 : vector<64x16xi1> to vector<64x16xi1>
    %19 = arith.xori %15, %18 : vector<64x16xi1>
    %20 = arith.andi %19, %13 : vector<64x16xi1>
    %21 = vector.broadcast %9 : i32 to vector<64x16xi32>
    %22 = arith.addi %11, %21 : vector<64x16xi32>
    %23 = arith.select %20, %22, %11 : vector<64x16xi1>, vector<64x16xi32>
    %c1_i32_8 = arith.constant 1 : i32
    %24 = vector.broadcast %c1_i32_8 : i32 to vector<64x16xi32>
    %25 = arith.cmpi sge, %23, %24 : vector<64x16xi32>
    %c1_i32_9 = arith.constant 1 : i32
    %26 = tpu.dynamic_rotate %6 by %c1_i32_9 dim 0 : vector<64x16xf32>, i32 -> vector<64x16xf32>
    %cst_10 = arith.constant 0.000000e+00 : f32
    %27 = vector.broadcast %cst_10 : f32 to vector<64x16xf32>
    %28 = arith.select %25, %26, %27 : vector<64x16xi1>, vector<64x16xf32>
    %c31_i32 = arith.constant 31 : i32
    %29 = vector.broadcast %c31_i32 : i32 to vector<64x16xi32>
    %30 = arith.cmpi slt, %23, %29 : vector<64x16xi32>
    %c63_i32 = arith.constant 63 : i32
    %31 = tpu.dynamic_rotate %6 by %c63_i32 dim 0 : vector<64x16xf32>, i32 -> vector<64x16xf32>
    %cst_11 = arith.constant 0.000000e+00 : f32
    %32 = vector.broadcast %cst_11 : f32 to vector<64x16xf32>
    %33 = arith.select %30, %31, %32 : vector<64x16xi1>, vector<64x16xf32>
    %34 = tpu.concatenate %28, %6, %33 in 1 : vector<64x16xf32>, vector<64x16xf32>, vector<64x16xf32> -> vector<64x48xf32>
    %35 = arith.truncf %34 : vector<64x48xf32> to vector<64x48xbf16>
    %c0_12 = arith.constant 0 : index
    %c0_13 = arith.constant 0 : index
    %c0_14 = arith.constant 0 : index
    %36 = vector.load %arg4[%c0_12, %c0_13, %c0_14] : memref<3x48x32xbf16, #tpu.memory_space<vmem>>, vector<1x48x32xbf16>
    %37 = vector.shape_cast %36 : vector<1x48x32xbf16> to vector<48x32xbf16>
    %cst_15 = arith.constant dense<0.000000e+00> : vector<64x32xf32>
    %38 = tpu.matmul %35, %37, %cst_15 {dimension_numbers = #tpu.dot_dimension_numbers<[1], [0], [0], [1], [0, 0, 1, 1], [], []>} : vector<64x48xbf16>, vector<48x32xbf16>, vector<64x32xf32> -> vector<64x32xf32>
    %c0_16 = arith.constant 0 : index
    %c0_17 = arith.constant 0 : index
    %c0_18 = arith.constant 0 : index
    %39 = vector.load %arg5[%c0_16, %c0_17, %c0_18] : memref<3x1x32xf32, #tpu.memory_space<vmem>>, vector<1x1x32xf32>
    %40 = vector.shape_cast %39 : vector<1x1x32xf32> to vector<1x32xf32>
    %41 = vector.broadcast %40 : vector<1x32xf32> to vector<64x32xf32>
    %42 = arith.addf %38, %41 : vector<64x32xf32>
    %43 = vector.extract_strided_slice %42 {offsets = [0, 0], sizes = [64, 16], strides = [1, 1]} : vector<64x32xf32> to vector<64x16xf32>
    %44 = vector.extract_strided_slice %42 {offsets = [0, 16], sizes = [64, 16], strides = [1, 1]} : vector<64x32xf32> to vector<64x16xf32>
    %45 = math.tanh %43 : vector<64x16xf32>
    %46 = arith.negf %44 : vector<64x16xf32>
    %47 = math.exp %46 : vector<64x16xf32>
    %cst_19 = arith.constant 1.000000e+00 : f32
    %48 = vector.broadcast %cst_19 : f32 to vector<64x16xf32>
    %49 = arith.addf %48, %47 : vector<64x16xf32>
    %50 = arith.divf %48, %49 : vector<64x16xf32>
    %51 = arith.mulf %45, %50 : vector<64x16xf32>
    %52 = arith.truncf %51 : vector<64x16xf32> to vector<64x16xbf16>
    %c0_20 = arith.constant 0 : index
    %c0_21 = arith.constant 0 : index
    %c0_22 = arith.constant 0 : index
    %53 = vector.load %arg6[%c0_20, %c0_21, %c0_22] : memref<3x16x16xbf16, #tpu.memory_space<vmem>>, vector<1x16x16xbf16>
    %54 = vector.shape_cast %53 : vector<1x16x16xbf16> to vector<16x16xbf16>
    %cst_23 = arith.constant dense<0.000000e+00> : vector<64x16xf32>
    %55 = tpu.matmul %52, %54, %cst_23 {dimension_numbers = #tpu.dot_dimension_numbers<[1], [0], [0], [1], [0, 0, 1, 1], [], []>} : vector<64x16xbf16>, vector<16x16xbf16>, vector<64x16xf32> -> vector<64x16xf32>
    %c0_24 = arith.constant 0 : index
    %c0_25 = arith.constant 0 : index
    %c0_26 = arith.constant 0 : index
    %56 = vector.load %arg7[%c0_24, %c0_25, %c0_26] : memref<3x1x16xf32, #tpu.memory_space<vmem>>, vector<1x1x16xf32>
    %57 = vector.shape_cast %56 : vector<1x1x16xf32> to vector<1x16xf32>
    %58 = vector.broadcast %57 : vector<1x16xf32> to vector<64x16xf32>
    %59 = arith.addf %55, %58 : vector<64x16xf32>
    %60 = arith.addf %6, %59 : vector<64x16xf32>
    %c2_i32 = arith.constant 2 : i32
    %61 = vector.broadcast %c2_i32 : i32 to vector<64x16xi32>
    %62 = arith.cmpi sge, %23, %61 : vector<64x16xi32>
    %c2_i32_27 = arith.constant 2 : i32
    %63 = tpu.dynamic_rotate %59 by %c2_i32_27 dim 0 : vector<64x16xf32>, i32 -> vector<64x16xf32>
    %cst_28 = arith.constant 0.000000e+00 : f32
    %64 = vector.broadcast %cst_28 : f32 to vector<64x16xf32>
    %65 = arith.select %62, %63, %64 : vector<64x16xi1>, vector<64x16xf32>
    %c30_i32 = arith.constant 30 : i32
    %66 = vector.broadcast %c30_i32 : i32 to vector<64x16xi32>
    %67 = arith.cmpi slt, %23, %66 : vector<64x16xi32>
    %c62_i32 = arith.constant 62 : i32
    %68 = tpu.dynamic_rotate %59 by %c62_i32 dim 0 : vector<64x16xf32>, i32 -> vector<64x16xf32>
    %cst_29 = arith.constant 0.000000e+00 : f32
    %69 = vector.broadcast %cst_29 : f32 to vector<64x16xf32>
    %70 = arith.select %67, %68, %69 : vector<64x16xi1>, vector<64x16xf32>
    %71 = tpu.concatenate %65, %59, %70 in 1 : vector<64x16xf32>, vector<64x16xf32>, vector<64x16xf32> -> vector<64x48xf32>
    %72 = arith.truncf %71 : vector<64x48xf32> to vector<64x48xbf16>
    %c1 = arith.constant 1 : index
    %c0_30 = arith.constant 0 : index
    %c0_31 = arith.constant 0 : index
    %73 = vector.load %arg4[%c1, %c0_30, %c0_31] : memref<3x48x32xbf16, #tpu.memory_space<vmem>>, vector<1x48x32xbf16>
    %74 = vector.shape_cast %73 : vector<1x48x32xbf16> to vector<48x32xbf16>
    %cst_32 = arith.constant dense<0.000000e+00> : vector<64x32xf32>
    %75 = tpu.matmul %72, %74, %cst_32 {dimension_numbers = #tpu.dot_dimension_numbers<[1], [0], [0], [1], [0, 0, 1, 1], [], []>} : vector<64x48xbf16>, vector<48x32xbf16>, vector<64x32xf32> -> vector<64x32xf32>
    %c1_33 = arith.constant 1 : index
    %c0_34 = arith.constant 0 : index
    %c0_35 = arith.constant 0 : index
    %76 = vector.load %arg5[%c1_33, %c0_34, %c0_35] : memref<3x1x32xf32, #tpu.memory_space<vmem>>, vector<1x1x32xf32>
    %77 = vector.shape_cast %76 : vector<1x1x32xf32> to vector<1x32xf32>
    %78 = vector.broadcast %77 : vector<1x32xf32> to vector<64x32xf32>
    %79 = arith.addf %75, %78 : vector<64x32xf32>
    %80 = vector.extract_strided_slice %79 {offsets = [0, 0], sizes = [64, 16], strides = [1, 1]} : vector<64x32xf32> to vector<64x16xf32>
    %81 = vector.extract_strided_slice %79 {offsets = [0, 16], sizes = [64, 16], strides = [1, 1]} : vector<64x32xf32> to vector<64x16xf32>
    %82 = math.tanh %80 : vector<64x16xf32>
    %83 = arith.negf %81 : vector<64x16xf32>
    %84 = math.exp %83 : vector<64x16xf32>
    %cst_36 = arith.constant 1.000000e+00 : f32
    %85 = vector.broadcast %cst_36 : f32 to vector<64x16xf32>
    %86 = arith.addf %85, %84 : vector<64x16xf32>
    %87 = arith.divf %85, %86 : vector<64x16xf32>
    %88 = arith.mulf %82, %87 : vector<64x16xf32>
    %89 = arith.truncf %88 : vector<64x16xf32> to vector<64x16xbf16>
    %c1_37 = arith.constant 1 : index
    %c0_38 = arith.constant 0 : index
    %c0_39 = arith.constant 0 : index
    %90 = vector.load %arg6[%c1_37, %c0_38, %c0_39] : memref<3x16x16xbf16, #tpu.memory_space<vmem>>, vector<1x16x16xbf16>
    %91 = vector.shape_cast %90 : vector<1x16x16xbf16> to vector<16x16xbf16>
    %cst_40 = arith.constant dense<0.000000e+00> : vector<64x16xf32>
    %92 = tpu.matmul %89, %91, %cst_40 {dimension_numbers = #tpu.dot_dimension_numbers<[1], [0], [0], [1], [0, 0, 1, 1], [], []>} : vector<64x16xbf16>, vector<16x16xbf16>, vector<64x16xf32> -> vector<64x16xf32>
    %c1_41 = arith.constant 1 : index
    %c0_42 = arith.constant 0 : index
    %c0_43 = arith.constant 0 : index
    %93 = vector.load %arg7[%c1_41, %c0_42, %c0_43] : memref<3x1x16xf32, #tpu.memory_space<vmem>>, vector<1x1x16xf32>
    %94 = vector.shape_cast %93 : vector<1x1x16xf32> to vector<1x16xf32>
    %95 = vector.broadcast %94 : vector<1x16xf32> to vector<64x16xf32>
    %96 = arith.addf %92, %95 : vector<64x16xf32>
    %97 = arith.addf %60, %96 : vector<64x16xf32>
    %c4_i32 = arith.constant 4 : i32
    %98 = vector.broadcast %c4_i32 : i32 to vector<64x16xi32>
    %99 = arith.cmpi sge, %23, %98 : vector<64x16xi32>
    %c4_i32_44 = arith.constant 4 : i32
    %100 = tpu.dynamic_rotate %96 by %c4_i32_44 dim 0 : vector<64x16xf32>, i32 -> vector<64x16xf32>
    %cst_45 = arith.constant 0.000000e+00 : f32
    %101 = vector.broadcast %cst_45 : f32 to vector<64x16xf32>
    %102 = arith.select %99, %100, %101 : vector<64x16xi1>, vector<64x16xf32>
    %c28_i32 = arith.constant 28 : i32
    %103 = vector.broadcast %c28_i32 : i32 to vector<64x16xi32>
    %104 = arith.cmpi slt, %23, %103 : vector<64x16xi32>
    %c60_i32 = arith.constant 60 : i32
    %105 = tpu.dynamic_rotate %96 by %c60_i32 dim 0 : vector<64x16xf32>, i32 -> vector<64x16xf32>
    %cst_46 = arith.constant 0.000000e+00 : f32
    %106 = vector.broadcast %cst_46 : f32 to vector<64x16xf32>
    %107 = arith.select %104, %105, %106 : vector<64x16xi1>, vector<64x16xf32>
    %108 = tpu.concatenate %102, %96, %107 in 1 : vector<64x16xf32>, vector<64x16xf32>, vector<64x16xf32> -> vector<64x48xf32>
    %109 = arith.truncf %108 : vector<64x48xf32> to vector<64x48xbf16>
    %c2 = arith.constant 2 : index
    %c0_47 = arith.constant 0 : index
    %c0_48 = arith.constant 0 : index
    %110 = vector.load %arg4[%c2, %c0_47, %c0_48] : memref<3x48x32xbf16, #tpu.memory_space<vmem>>, vector<1x48x32xbf16>
    %111 = vector.shape_cast %110 : vector<1x48x32xbf16> to vector<48x32xbf16>
    %cst_49 = arith.constant dense<0.000000e+00> : vector<64x32xf32>
    %112 = tpu.matmul %109, %111, %cst_49 {dimension_numbers = #tpu.dot_dimension_numbers<[1], [0], [0], [1], [0, 0, 1, 1], [], []>} : vector<64x48xbf16>, vector<48x32xbf16>, vector<64x32xf32> -> vector<64x32xf32>
    %c2_50 = arith.constant 2 : index
    %c0_51 = arith.constant 0 : index
    %c0_52 = arith.constant 0 : index
    %113 = vector.load %arg5[%c2_50, %c0_51, %c0_52] : memref<3x1x32xf32, #tpu.memory_space<vmem>>, vector<1x1x32xf32>
    %114 = vector.shape_cast %113 : vector<1x1x32xf32> to vector<1x32xf32>
    %115 = vector.broadcast %114 : vector<1x32xf32> to vector<64x32xf32>
    %116 = arith.addf %112, %115 : vector<64x32xf32>
    %117 = vector.extract_strided_slice %116 {offsets = [0, 0], sizes = [64, 16], strides = [1, 1]} : vector<64x32xf32> to vector<64x16xf32>
    %118 = vector.extract_strided_slice %116 {offsets = [0, 16], sizes = [64, 16], strides = [1, 1]} : vector<64x32xf32> to vector<64x16xf32>
    %119 = math.tanh %117 : vector<64x16xf32>
    %120 = arith.negf %118 : vector<64x16xf32>
    %121 = math.exp %120 : vector<64x16xf32>
    %cst_53 = arith.constant 1.000000e+00 : f32
    %122 = vector.broadcast %cst_53 : f32 to vector<64x16xf32>
    %123 = arith.addf %122, %121 : vector<64x16xf32>
    %124 = arith.divf %122, %123 : vector<64x16xf32>
    %125 = arith.mulf %119, %124 : vector<64x16xf32>
    %126 = arith.truncf %125 : vector<64x16xf32> to vector<64x16xbf16>
    %c2_54 = arith.constant 2 : index
    %c0_55 = arith.constant 0 : index
    %c0_56 = arith.constant 0 : index
    %127 = vector.load %arg6[%c2_54, %c0_55, %c0_56] : memref<3x16x16xbf16, #tpu.memory_space<vmem>>, vector<1x16x16xbf16>
    %128 = vector.shape_cast %127 : vector<1x16x16xbf16> to vector<16x16xbf16>
    %cst_57 = arith.constant dense<0.000000e+00> : vector<64x16xf32>
    %129 = tpu.matmul %126, %128, %cst_57 {dimension_numbers = #tpu.dot_dimension_numbers<[1], [0], [0], [1], [0, 0, 1, 1], [], []>} : vector<64x16xbf16>, vector<16x16xbf16>, vector<64x16xf32> -> vector<64x16xf32>
    %c2_58 = arith.constant 2 : index
    %c0_59 = arith.constant 0 : index
    %c0_60 = arith.constant 0 : index
    %130 = vector.load %arg7[%c2_58, %c0_59, %c0_60] : memref<3x1x16xf32, #tpu.memory_space<vmem>>, vector<1x1x16xf32>
    %131 = vector.shape_cast %130 : vector<1x1x16xf32> to vector<1x16xf32>
    %132 = vector.broadcast %131 : vector<1x16xf32> to vector<64x16xf32>
    %133 = arith.addf %129, %132 : vector<64x16xf32>
    %134 = arith.addf %97, %133 : vector<64x16xf32>
    %c0_61 = arith.constant 0 : index
    %c0_62 = arith.constant 0 : index
    %135 = vector.load %arg8[%c0_61, %c0_62] : memref<64x16xf32, #tpu.memory_space<vmem>>, vector<64x16xf32>
    tpu.vector_store %arg8[%c0_61, %c0_62], %134 {strides = array<i32>} : memref<64x16xf32, #tpu.memory_space<vmem>>, vector<64x16xf32>,
    return
  }
  func.func @transform_0(%arg0: i32) -> (i32, i32) {
    %c0_i32 = arith.constant 0 : i32
    %c0_i32_0 = arith.constant 0 : i32
    return %arg0, %c0_i32 : i32, i32
  }
  func.func @transform_1(%arg0: i32) -> (i32, i32) {
    %c0_i32 = arith.constant 0 : i32
    %c0_i32_0 = arith.constant 0 : i32
    %c0_i32_1 = arith.constant 0 : i32
    return %c0_i32, %c0_i32_0 : i32, i32
  }
  func.func @transform_2(%arg0: i32) -> (i32, i32) {
    %c0_i32 = arith.constant 0 : i32
    %c0_i32_0 = arith.constant 0 : i32
    %c0_i32_1 = arith.constant 0 : i32
    return %c0_i32, %c0_i32_0 : i32, i32
  }
  func.func @transform_3(%arg0: i32) -> (i32, i32, i32) {
    %c0_i32 = arith.constant 0 : i32
    %c0_i32_0 = arith.constant 0 : i32
    %c0_i32_1 = arith.constant 0 : i32
    %c0_i32_2 = arith.constant 0 : i32
    return %c0_i32, %c0_i32_0, %c0_i32_1 : i32, i32, i32
  }
  func.func @transform_4(%arg0: i32) -> (i32, i32, i32) {
    %c0_i32 = arith.constant 0 : i32
    %c0_i32_0 = arith.constant 0 : i32
    %c0_i32_1 = arith.constant 0 : i32
    %c0_i32_2 = arith.constant 0 : i32
    return %c0_i32, %c0_i32_0, %c0_i32_1 : i32, i32, i32
  }
  func.func @transform_5(%arg0: i32) -> (i32, i32, i32) {
    %c0_i32 = arith.constant 0 : i32
    %c0_i32_0 = arith.constant 0 : i32
    %c0_i32_1 = arith.constant 0 : i32
    %c0_i32_2 = arith.constant 0 : i32
    return %c0_i32, %c0_i32_0, %c0_i32_1 : i32, i32, i32
  }
  func.func @transform_6(%arg0: i32) -> (i32, i32, i32) {
    %c0_i32 = arith.constant 0 : i32
    %c0_i32_0 = arith.constant 0 : i32
    %c0_i32_1 = arith.constant 0 : i32
    %c0_i32_2 = arith.constant 0 : i32
    return %c0_i32, %c0_i32_0, %c0_i32_1 : i32, i32, i32
  }
  func.func @transform_7(%arg0: i32) -> (i32, i32) {
    %c0_i32 = arith.constant 0 : i32
    %c0_i32_0 = arith.constant 0 : i32
    return %arg0, %c0_i32 : i32, i32
  }
}

</mosaic_0001>

<llo_original>
// kernel: tpu_custom_call.1
$region0: #{tpu_custom_call.1}
  #allocation0 [shape = 'u32[]', space=smem, size = 0x4, offset = 0x4, fixed_abs, tag = 'smem constant byte address 0x4 - core index']
  #allocation1 [shape = 'u32[144,128]{1,0:T(1,128)}', space=vmem, size = 0x12000, scoped, tag = 'internal scratch']
  %s0 = inlined_call_operand.vmem [shape: f32[64,8], index: 0, kind: input, shape index: {}]
  %s1 = inlined_call_operand.vmem [shape: bf16[8,16], index: 1, kind: input, shape index: {}]
  %s2 = inlined_call_operand.vmem [shape: f32[1,16], index: 2, kind: input, shape index: {}]
  %s3 = inlined_call_operand.vmem [shape: bf16[3,48,32], index: 3, kind: input, shape index: {}]
  %s4 = inlined_call_operand.vmem [shape: f32[3,1,32], index: 4, kind: input, shape index: {}]
  %s5 = inlined_call_operand.vmem [shape: bf16[3,16,16], index: 5, kind: input, shape index: {}]
  %s6 = inlined_call_operand.vmem [shape: f32[3,1,16], index: 6, kind: input, shape index: {}]
  %s7 = inlined_call_operand.vmem [shape: f32[64,16], index: 7, kind: output, shape index: {}]
  %s8 = sld [smem:[#allocation0]]
  $region38: #{tpu_custom_call.1} parent=0
    _
  %s10 = ssub.s32 1, %s8
  %s11 = scalar_select 0, %s10, %s8
  // Predicated region
  $region2: #{tpu_custom_call.1} parent=0 // pred_check
    _
  $region3: #{tpu_custom_call.1} parent=0 // pred_check_branch
    %13 = sbr.rel (0) target = $region5
  $region4: #{tpu_custom_call.1} parent=0 // pred_region
    _
  $region5: #{tpu_custom_call.1} parent=0 // pred_fallthru
    _
  // Predicated region
  $region6: #{tpu_custom_call.1} parent=0 // pred_check
    _
  $region7: #{tpu_custom_call.1} parent=0 // pred_check_branch
    %15 = sbr.rel (0) target = $region9
  $region8: #{tpu_custom_call.1} parent=0 // pred_region
    _
  $region9: #{tpu_custom_call.1} parent=0 // pred_fallthru
    _
  // Predicated region
  $region10: #{tpu_custom_call.1} parent=0 // pred_check
    _
  $region11: #{tpu_custom_call.1} parent=0 // pred_check_branch
    %17 = sbr.rel (0) target = $region13
  $region12: #{tpu_custom_call.1} parent=0 // pred_region
    _
  $region13: #{tpu_custom_call.1} parent=0 // pred_fallthru
    _
  // Predicated region
  $region14: #{tpu_custom_call.1} parent=0 // pred_check
    _
  $region15: #{tpu_custom_call.1} parent=0 // pred_check_branch
    %19 = sbr.rel (0) target = $region17
  $region16: #{tpu_custom_call.1} parent=0 // pred_region
    _
  $region17: #{tpu_custom_call.1} parent=0 // pred_fallthru
    _
  // Predicated region
  $region18: #{tpu_custom_call.1} parent=0 // pred_check
    _
  $region19: #{tpu_custom_call.1} parent=0 // pred_check_branch
    %21 = sbr.rel (0) target = $region21
  $region20: #{tpu_custom_call.1} parent=0 // pred_region
    _
  $region21: #{tpu_custom_call.1} parent=0 // pred_fallthru
    _
  // Predicated region
  $region22: #{tpu_custom_call.1} parent=0 // pred_check
    _
  $region23: #{tpu_custom_call.1} parent=0 // pred_check_branch
    %23 = sbr.rel (0) target = $region25
  $region24: #{tpu_custom_call.1} parent=0 // pred_region
    _
  $region25: #{tpu_custom_call.1} parent=0 // pred_fallthru
    _
  // Predicated region
  $region26: #{tpu_custom_call.1} parent=0 // pred_check
    _
  $region27: #{tpu_custom_call.1} parent=0 // pred_check_branch
    %25 = sbr.rel (0) target = $region29
  $region28: #{tpu_custom_call.1} parent=0 // pred_region
    _
  $region29: #{tpu_custom_call.1} parent=0 // pred_fallthru
    _
  %v27 = vld [vmem:[%s0] sm:$0xff]
  %v28 = vld [vmem:[%s0 + $0x8] sm:$0xff]
  %v29 = vld [vmem:[%s0 + $0x10] sm:$0xff]
  %v30 = vld [vmem:[%s0 + $0x18] sm:$0xff]
  %v31 = vld [vmem:[%s0 + $0x20] sm:$0xff]
  %v32 = vld [vmem:[%s0 + $0x28] sm:$0xff]
  %v33 = vld [vmem:[%s0 + $0x30] sm:$0xff]
  %v34 = vld [vmem:[%s0 + $0x38] sm:$0xff]
  %v35 = vpack.c.bf16 %v28, %v27
  %v36 = vpack.c.bf16 %v30, %v29
  %v37 = vpack.c.bf16 %v32, %v31
  %v38 = vpack.c.bf16 %v34, %v33
  %v39 = vld [vmem:[%s1] sm:$0xf]
  %v40 = vld [vmem:[%s2] sm:$0x1]
  %v42 = vlaneseq
  %v43 = vshrl.u32 %v42, 7
  %v44 = vsub.s32 0, %v43
  %v45 = vrot.slane %v40, %v44
  %vm47 = vcmask 64512
  %v49 = vsel %vm47, %v35, 0
  %v52 = vsel %vm47, %v36, 0
  %v55 = vsel %vm47, %v37, 0
  %v58 = vsel %vm47, %v38, 0
  %vm60 = vcmask 1043456
  %v62 = vsel %vm60, %v39, 0
  %64 = vmatprep.subr.bf16.mxu0 0
  %65 = vmatpush1.bf16.msra.mxu0 0
  %66 = vmatprep.subr.bf16.mxu0 0
  %67 = vmatpush1.bf16.msra.mxu0 0
  %68 = vmatprep.subr.bf16.mxu0 0
  %69 = vmatpush1.bf16.msra.mxu0 0
  %70 = vmatprep.subr.bf16.mxu0 0
  %71 = vmatpush1.bf16.msra.mxu0 0
  %72 = vmatprep.subr.bf16.mxu0 0
  %73 = vmatpush1.bf16.msra.mxu0 0
  %74 = vmatprep.subr.bf16.mxu0 0
  %75 = vmatpush1.bf16.msra.mxu0 0
  %76 = vmatprep.subr.bf16.mxu0 0
  %77 = vmatpush1.bf16.msra.mxu0 0
  %78 = vmatprep.subr.bf16.mxu0 0
  %79 = vmatpush1.bf16.msra.mxu0 %v62
  %80 = vmatprep.subr.bf16.mxu0 0
  %81 = vmatpush2.bf16.msra.mxu0 0
  %82 = vmatprep.subr.bf16.mxu0 0
  %83 = vmatpush2.bf16.msra.mxu0 0
  %84 = vmatprep.subr.bf16.mxu0 0
  %85 = vmatpush2.bf16.msra.mxu0 0
  %86 = vmatprep.subr.bf16.mxu0 0
  %87 = vmatpush2.bf16.msra.mxu0 0
  %88 = vmatprep.subr.bf16.mxu0 0
  %89 = vmatpush2.bf16.msra.mxu0 0
  %90 = vmatprep.subr.bf16.mxu0 0
  %91 = vmatpush2.bf16.msra.mxu0 0
  %92 = vmatprep.subr.bf16.mxu0 0
  %93 = vmatpush2.bf16.msra.mxu0 0
  %94 = vmatprep.subr.bf16.mxu0 0
  %95 = vmatpush2.bf16.msra.mxu0 0
  %96 = vmatprep.mubr.bf16.mxu0 0
  %97 = vmatmul.mubr.bf16.gmra.mxu0 %v49
  %v98 = vpop.f32.mrf.mxu0
  %v99 = vadd.f32 %v45, %v98
  %v100 = vpop.f32.mrf.mxu0
  %v101 = vpop.f32.mrf.mxu0
  %v102 = vadd.f32 %v45, %v101
  %v103 = vpop.f32.mrf.mxu0
  %104 = vmatprep.mubr.bf16.mxu0 0
  %105 = vmatmul.mubr.bf16.gmra.mxu0 %v52
  %v106 = vpop.f32.mrf.mxu0
  %v107 = vadd.f32 %v45, %v106
  %v108 = vpop.f32.mrf.mxu0
  %v109 = vpop.f32.mrf.mxu0
  %v110 = vadd.f32 %v45, %v109
  %v111 = vpop.f32.mrf.mxu0
  %112 = vmatprep.mubr.bf16.mxu0 0
  %113 = vmatmul.mubr.bf16.gmra.mxu0 %v55
  %v114 = vpop.f32.mrf.mxu0
  %v115 = vadd.f32 %v45, %v114
  %v116 = vpop.f32.mrf.mxu0
  %v117 = vpop.f32.mrf.mxu0
  %v118 = vadd.f32 %v45, %v117
  %v119 = vpop.f32.mrf.mxu0
  %120 = vmatprep.mubr.bf16.mxu0 0
  %121 = vmatmul.mubr.bf16.gmra.mxu0 %v58
  %v122 = vpop.f32.mrf.mxu0
  %v123 = vadd.f32 %v45, %v122
  %v124 = vpop.f32.mrf.mxu0
  %v125 = vpop.f32.mrf.mxu0
  %v126 = vadd.f32 %v45, %v125
  %v127 = vpop.f32.mrf.mxu0
  %128 = vdwg.mxu0
  %v129 = vlaneseq
  %v130 = vshrl.u32 %v129, 7
  %v131 = vadd.s32 %v130, 8
  %v132 = vadd.s32 %v130, 16
  %v133 = vadd.s32 %v130, 24
  %v134 = vadd.s32 %v130, 32
  %v135 = vadd.s32 %v130, 40
  %v136 = vadd.s32 %v130, 48
  %v137 = vadd.s32 %v130, 56
  %vm138 = vcmp.lt.s32.totalorder %v130, 0
  %v139 = vsub.s32 0, %v130
  %v140 = vsel %vm138, %v139, %v130
  %v141 = vshrl.u32 %v140, 5
  %v142 = vand.u32 %v140, 31
  %v143 = vsub.s32 0, %v142
  %v144 = vsel %vm138, %v143, %v142
  %vm145 = vcmp.lt.s32.totalorder %v131, 0
  %v146 = vsub.s32 0, %v131
  %v147 = vsel %vm145, %v146, %v131
  %v148 = vshrl.u32 %v147, 5
  %v149 = vand.u32 %v147, 31
  %v150 = vsub.s32 0, %v149
  %v151 = vsel %vm145, %v150, %v149
  %vm152 = vcmp.lt.s32.totalorder %v132, 0
  %v153 = vsub.s32 0, %v132
  %v154 = vsel %vm152, %v153, %v132
  %v155 = vshrl.u32 %v154, 5
  %v156 = vand.u32 %v154, 31
  %v157 = vsub.s32 0, %v156
  %v158 = vsel %vm152, %v157, %v156
  %vm159 = vcmp.lt.s32.totalorder %v133, 0
  %v160 = vsub.s32 0, %v133
  %v161 = vsel %vm159, %v160, %v133
  %v162 = vshrl.u32 %v161, 5
  %v163 = vand.u32 %v161, 31
  %v164 = vsub.s32 0, %v163
  %v165 = vsel %vm159, %v164, %v163
  %vm166 = vcmp.lt.s32.totalorder %v134, 0
  %v167 = vsub.s32 0, %v134
  %v168 = vsel %vm166, %v167, %v134
  %v169 = vshrl.u32 %v168, 5
  %v170 = vand.u32 %v168, 31
  %v171 = vsub.s32 0, %v170
  %v172 = vsel %vm166, %v171, %v170
  %vm173 = vcmp.lt.s32.totalorder %v135, 0
  %v174 = vsub.s32 0, %v135
  %v175 = vsel %vm173, %v174, %v135
  %v176 = vshrl.u32 %v175, 5
  %v177 = vand.u32 %v175, 31
  %v178 = vsub.s32 0, %v177
  %v179 = vsel %vm173, %v178, %v177
  %vm180 = vcmp.lt.s32.totalorder %v136, 0
  %v181 = vsub.s32 0, %v136
  %v182 = vsel %vm180, %v181, %v136
  %v183 = vshrl.u32 %v182, 5
  %v184 = vand.u32 %v182, 31
  %v185 = vsub.s32 0, %v184
  %v186 = vsel %vm180, %v185, %v184
  %vm187 = vcmp.lt.s32.totalorder %v137, 0
  %v188 = vsub.s32 0, %v137
  %v189 = vsel %vm187, %v188, %v137
  %v190 = vshrl.u32 %v189, 5
  %v191 = vand.u32 %v189, 31
  %v192 = vsub.s32 0, %v191
  %v193 = vsel %vm187, %v192, %v191
  %vm194 = vcmp.ne.s32.totalorder %v144, 0
  %vm195 = vcmp.ne.s32.totalorder %v151, 0
  %vm196 = vcmp.ne.s32.totalorder %v158, 0
  %vm197 = vcmp.ne.s32.totalorder %v165, 0
  %vm198 = vcmp.ne.s32.totalorder %v172, 0
  %vm199 = vcmp.ne.s32.totalorder %v179, 0
  %vm200 = vcmp.ne.s32.totalorder %v186, 0
  %vm201 = vcmp.ne.s32.totalorder %v193, 0
  %vm202 = vcmp.lt.s32.totalorder %v144, 0
  %vm203 = vcmp.lt.s32.totalorder %v151, 0
  %vm204 = vcmp.lt.s32.totalorder %v158, 0
  %vm205 = vcmp.lt.s32.totalorder %v165, 0
  %vm206 = vcmp.lt.s32.totalorder %v172, 0
  %vm207 = vcmp.lt.s32.totalorder %v179, 0
  %vm208 = vcmp.lt.s32.totalorder %v186, 0
  %vm209 = vcmp.lt.s32.totalorder %v193, 0
  %vm210 = vmand %vm202, %vm194
  %vm211 = vmand %vm203, %vm195
  %vm212 = vmand %vm204, %vm196
  %vm213 = vmand %vm205, %vm197
  %vm214 = vmand %vm206, %vm198
  %vm215 = vmand %vm207, %vm199
  %vm216 = vmand %vm208, %vm200
  %vm217 = vmand %vm209, %vm201
  %v218 = vadd.s32 %v144, 32
  %v219 = vadd.s32 %v151, 32
  %v220 = vadd.s32 %v158, 32
  %v221 = vadd.s32 %v165, 32
  %v222 = vadd.s32 %v172, 32
  %v223 = vadd.s32 %v179, 32
  %v224 = vadd.s32 %v186, 32
  %v225 = vadd.s32 %v193, 32
  %v226 = vsel %vm210, %v218, %v144
  %v227 = vsel %vm211, %v219, %v151
  %v228 = vsel %vm212, %v220, %v158
  %v229 = vsel %vm213, %v221, %v165
  %v230 = vsel %vm214, %v222, %v172
  %v231 = vsel %vm215, %v223, %v179
  %v232 = vsel %vm216, %v224, %v186
  %v233 = vsel %vm217, %v225, %v193
  %vm234 = vcmp.ge.s32.totalorder %v226, 1
  %vm235 = vcmp.ge.s32.totalorder %v227, 1
  %vm236 = vcmp.ge.s32.totalorder %v228, 1
  %vm237 = vcmp.ge.s32.totalorder %v229, 1
  %vm238 = vcmp.ge.s32.totalorder %v230, 1
  %vm239 = vcmp.ge.s32.totalorder %v231, 1
  %vm240 = vcmp.ge.s32.totalorder %v232, 1
  %vm241 = vcmp.ge.s32.totalorder %v233, 1
  %v242 = vrot.slane %v99, 7
  %v243 = vrot.slane %v102, 7
  %v244 = vrot.slane %v107, 7
  %v245 = vrot.slane %v110, 7
  %v246 = vrot.slane %v115, 7
  %v247 = vrot.slane %v118, 7
  %v248 = vrot.slane %v123, 7
  %v249 = vrot.slane %v126, 7
  %vm250 = vcmp.lt.s32.totalorder %v130, 1
  %v251 = vsel %vm250, %v248, %v249
  %v252 = vsel %vm250, %v247, %v248
  %v253 = vsel %vm250, %v246, %v247
  %v254 = vsel %vm250, %v245, %v246
  %v255 = vsel %vm250, %v244, %v245
  %v256 = vsel %vm250, %v243, %v244
  %v257 = vsel %vm250, %v242, %v243
  %v258 = vsel %vm250, %v249, %v242
  %v259 = vsel %vm234, %v258, 0.0
  %v260 = vsel %vm235, %v257, 0.0
  %v261 = vsel %vm236, %v256, 0.0
  %v262 = vsel %vm237, %v255, 0.0
  %v263 = vsel %vm238, %v254, 0.0
  %v264 = vsel %vm239, %v253, 0.0
  %v265 = vsel %vm240, %v252, 0.0
  %v266 = vsel %vm241, %v251, 0.0
  %vm267 = vcmp.lt.s32.totalorder %v226, 31
  %vm268 = vcmp.lt.s32.totalorder %v227, 31
  %vm269 = vcmp.lt.s32.totalorder %v228, 31
  %vm270 = vcmp.lt.s32.totalorder %v229, 31
  %vm271 = vcmp.lt.s32.totalorder %v230, 31
  %vm272 = vcmp.lt.s32.totalorder %v231, 31
  %vm273 = vcmp.lt.s32.totalorder %v232, 31
  %vm274 = vcmp.lt.s32.totalorder %v233, 31
  %v275 = vrot.slane %v99, 1
  %v276 = vrot.slane %v102, 1
  %v277 = vrot.slane %v107, 1
  %v278 = vrot.slane %v110, 1
  %v279 = vrot.slane %v115, 1
  %v280 = vrot.slane %v118, 1
  %v281 = vrot.slane %v123, 1
  %v282 = vrot.slane %v126, 1
  %vm283 = vcmp.lt.s32.totalorder %v130, 7
  %v284 = vsel %vm283, %v281, %v282
  %v285 = vsel %vm283, %v280, %v281
  %v286 = vsel %vm283, %v279, %v280
  %v287 = vsel %vm283, %v278, %v279
  %v288 = vsel %vm283, %v277, %v278
  %v289 = vsel %vm283, %v276, %v277
  %v290 = vsel %vm283, %v275, %v276
  %v291 = vsel %vm283, %v282, %v275
  %v292 = vsel %vm267, %v290, 0.0
  %v293 = vsel %vm268, %v289, 0.0
  %v294 = vsel %vm269, %v288, 0.0
  %v295 = vsel %vm270, %v287, 0.0
  %v296 = vsel %vm271, %v286, 0.0
  %v297 = vsel %vm272, %v285, 0.0
  %v298 = vsel %vm273, %v284, 0.0
  %v299 = vsel %vm274, %v291, 0.0
  %308 = vrot.lane.b32.xlu0 %v99, 16
  %v309 = vpop.permute.xlu0 %308
  %310 = vrot.lane.b32.xlu0 %v102, 16
  %v311 = vpop.permute.xlu0 %310
  %312 = vrot.lane.b32.xlu0 %v107, 16
  %v313 = vpop.permute.xlu0 %312
  %314 = vrot.lane.b32.xlu0 %v110, 16
  %v315 = vpop.permute.xlu0 %314
  %316 = vrot.lane.b32.xlu0 %v115, 16
  %v317 = vpop.permute.xlu0 %316
  %318 = vrot.lane.b32.xlu0 %v118, 16
  %v319 = vpop.permute.xlu0 %318
  %320 = vrot.lane.b32.xlu0 %v123, 16
  %v321 = vpop.permute.xlu0 %320
  %322 = vrot.lane.b32.xlu0 %v126, 16
  %v323 = vpop.permute.xlu0 %322
  %340 = vrot.lane.b32.xlu0 %v292, 32
  %v341 = vpop.permute.xlu0 %340
  %342 = vrot.lane.b32.xlu0 %v293, 32
  %v343 = vpop.permute.xlu0 %342
  %344 = vrot.lane.b32.xlu0 %v294, 32
  %v345 = vpop.permute.xlu0 %344
  %346 = vrot.lane.b32.xlu0 %v295, 32
  %v347 = vpop.permute.xlu0 %346
  %348 = vrot.lane.b32.xlu0 %v296, 32
  %v349 = vpop.permute.xlu0 %348
  %350 = vrot.lane.b32.xlu0 %v297, 32
  %v351 = vpop.permute.xlu0 %350
  %352 = vrot.lane.b32.xlu0 %v298, 32
  %v353 = vpop.permute.xlu0 %352
  %354 = vrot.lane.b32.xlu0 %v299, 32
  %v355 = vpop.permute.xlu0 %354
  %vm364 = vcmask 130048
  %v365 = vsel %vm364, %v259, %v309
  %v366 = vsel %vm364, %v260, %v311
  %v367 = vsel %vm364, %v261, %v313
  %v368 = vsel %vm364, %v262, %v315
  %v369 = vsel %vm364, %v263, %v317
  %v370 = vsel %vm364, %v264, %v319
  %v371 = vsel %vm364, %v265, %v321
  %v372 = vsel %vm364, %v266, %v323
  %vm373 = vcmask 261120
  %v374 = vsel %vm373, %v365, %v341
  %v375 = vsel %vm373, %v366, %v343
  %v376 = vsel %vm373, %v367, %v345
  %v377 = vsel %vm373, %v368, %v347
  %v378 = vsel %vm373, %v369, %v349
  %v379 = vsel %vm373, %v370, %v351
  %v380 = vsel %vm373, %v371, %v353
  %v381 = vsel %vm373, %v372, %v355
  %v382 = vpack.c.bf16 %v375, %v374
  %v383 = vpack.c.bf16 %v377, %v376
  %v384 = vpack.c.bf16 %v379, %v378
  %v385 = vpack.c.bf16 %v381, %v380
  %v386 = vld [vmem:[%s3] sm:$0xf]
  %v387 = vld [vmem:[%s3 + $0x4] sm:$0xf]
  %v388 = vld [vmem:[%s3 + $0x8] sm:$0xf]
  %v389 = vld [vmem:[%s3 + $0xc] sm:$0xf]
  %v390 = vld [vmem:[%s3 + $0x10] sm:$0xf]
  %v391 = vld [vmem:[%s3 + $0x14] sm:$0xf]
  %v392 = vld [vmem:[%s4] sm:$0x1]
  %v394 = vlaneseq
  %v395 = vshrl.u32 %v394, 7
  %v396 = vsub.s32 0, %v395
  %v397 = vrot.slane %v392, %v396
  %v405 = vunpack.c.l.b16 %v386
  %v406 = vunpack.c.l.b16 %v387
  %v407 = vunpack.c.l.b16 %v388
  %v408 = vunpack.c.l.b16 %v389
  %v409 = vunpack.c.l.b16 %v390
  %v410 = vunpack.c.l.b16 %v391
  %v411 = vpack.c.b16 %v406, %v405
  %v412 = vpack.c.b16 %v408, %v407
  %v413 = vpack.c.b16 %v410, %v409
  %vm417 = vcmask 392192
  %v419 = vsel %vm417, %v382, 0
  %v422 = vsel %vm417, %v383, 0
  %v425 = vsel %vm417, %v384, 0
  %v428 = vsel %vm417, %v385, 0
  %430 = vmatprep.subr.bf16.mxu0 0
  %431 = vmatpush1.bf16.msra.mxu0 0
  %432 = vmatprep.subr.bf16.mxu0 0
  %433 = vmatpush1.bf16.msra.mxu0 0
  %434 = vmatprep.subr.bf16.mxu0 0
  %435 = vmatpush1.bf16.msra.mxu0 0
  %436 = vmatprep.subr.bf16.mxu0 0
  %437 = vmatpush1.bf16.msra.mxu0 0
  %438 = vmatprep.subr.bf16.mxu0 0
  %439 = vmatpush1.bf16.msra.mxu0 0
  %440 = vmatprep.subr.bf16.mxu0 0
  %441 = vmatpush1.bf16.msra.mxu0 %v413
  %442 = vmatprep.subr.bf16.mxu0 0
  %443 = vmatpush1.bf16.msra.mxu0 %v412
  %444 = vmatprep.subr.bf16.mxu0 0
  %445 = vmatpush1.bf16.msra.mxu0 %v411
  %446 = vmatprep.subr.bf16.mxu0 0
  %447 = vmatpush2.bf16.msra.mxu0 0
  %448 = vmatprep.subr.bf16.mxu0 0
  %449 = vmatpush2.bf16.msra.mxu0 0
  %450 = vmatprep.subr.bf16.mxu0 0
  %451 = vmatpush2.bf16.msra.mxu0 0
  %452 = vmatprep.subr.bf16.mxu0 0
  %453 = vmatpush2.bf16.msra.mxu0 0
  %454 = vmatprep.subr.bf16.mxu0 0
  %455 = vmatpush2.bf16.msra.mxu0 0
  %456 = vmatprep.subr.bf16.mxu0 0
  %457 = vmatpush2.bf16.msra.mxu0 0
  %458 = vmatprep.subr.bf16.mxu0 0
  %459 = vmatpush2.bf16.msra.mxu0 0
  %460 = vmatprep.subr.bf16.mxu0 0
  %461 = vmatpush2.bf16.msra.mxu0 0
  %462 = vmatprep.mubr.bf16.mxu0 0
  %463 = vmatmul.mubr.bf16.gmra.mxu0 %v419
  %v464 = vpop.f32.mrf.mxu0
  %v465 = vadd.f32 %v397, %v464
  %v466 = vpop.f32.mrf.mxu0
  %v467 = vpop.f32.mrf.mxu0
  %v468 = vadd.f32 %v397, %v467
  %v469 = vpop.f32.mrf.mxu0
  %470 = vmatprep.mubr.bf16.mxu0 0
  %471 = vmatmul.mubr.bf16.gmra.mxu0 %v422
  %v472 = vpop.f32.mrf.mxu0
  %v473 = vadd.f32 %v397, %v472
  %v474 = vpop.f32.mrf.mxu0
  %v475 = vpop.f32.mrf.mxu0
  %v476 = vadd.f32 %v397, %v475
  %v477 = vpop.f32.mrf.mxu0
  %478 = vmatprep.mubr.bf16.mxu0 0
  %479 = vmatmul.mubr.bf16.gmra.mxu0 %v425
  %v480 = vpop.f32.mrf.mxu0
  %v481 = vadd.f32 %v397, %v480
  %v482 = vpop.f32.mrf.mxu0
  %v483 = vpop.f32.mrf.mxu0
  %v484 = vadd.f32 %v397, %v483
  %v485 = vpop.f32.mrf.mxu0
  %486 = vmatprep.mubr.bf16.mxu0 0
  %487 = vmatmul.mubr.bf16.gmra.mxu0 %v428
  %v488 = vpop.f32.mrf.mxu0
  %v489 = vadd.f32 %v397, %v488
  %v490 = vpop.f32.mrf.mxu0
  %v491 = vpop.f32.mrf.mxu0
  %v492 = vadd.f32 %v397, %v491
  %v493 = vpop.f32.mrf.mxu0
  %494 = vdwg.mxu0
  %v495 = vtanh.pop %v465
  %v496 = vtanh.pop %v468
  %v497 = vtanh.pop %v473
  %v498 = vtanh.pop %v476
  %v499 = vtanh.pop %v481
  %v500 = vtanh.pop %v484
  %v501 = vtanh.pop %v489
  %v502 = vtanh.pop %v492
  %v503 = vxor.u32 %v465, 2147483648
  %v504 = vxor.u32 %v468, 2147483648
  %v505 = vxor.u32 %v473, 2147483648
  %v506 = vxor.u32 %v476, 2147483648
  %v507 = vxor.u32 %v481, 2147483648
  %v508 = vxor.u32 %v484, 2147483648
  %v509 = vxor.u32 %v489, 2147483648
  %v510 = vxor.u32 %v492, 2147483648
  %v511 = vmul.f32 %v503, 1.442695
  %v512 = vpow.pop %v511
  %v513 = vmul.f32 %v504, 1.442695
  %v514 = vpow.pop %v513
  %v515 = vmul.f32 %v505, 1.442695
  %v516 = vpow.pop %v515
  %v517 = vmul.f32 %v506, 1.442695
  %v518 = vpow.pop %v517
  %v519 = vmul.f32 %v507, 1.442695
  %v520 = vpow.pop %v519
  %v521 = vmul.f32 %v508, 1.442695
  %v522 = vpow.pop %v521
  %v523 = vmul.f32 %v509, 1.442695
  %v524 = vpow.pop %v523
  %v525 = vmul.f32 %v510, 1.442695
  %v526 = vpow.pop %v525
  %v527 = vadd.f32 %v512, 1.0
  %v528 = vadd.f32 %v514, 1.0
  %v529 = vadd.f32 %v516, 1.0
  %v530 = vadd.f32 %v518, 1.0
  %v531 = vadd.f32 %v520, 1.0
  %v532 = vadd.f32 %v522, 1.0
  %v533 = vadd.f32 %v524, 1.0
  %v534 = vadd.f32 %v526, 1.0
  %v535 = vrcp.pop %v527
  %v536 = vmul.f32 1.0, %v535
  %v537 = vrcp.pop %v528
  %v538 = vmul.f32 1.0, %v537
  %v539 = vrcp.pop %v529
  %v540 = vmul.f32 1.0, %v539
  %v541 = vrcp.pop %v530
  %v542 = vmul.f32 1.0, %v541
  %v543 = vrcp.pop %v531
  %v544 = vmul.f32 1.0, %v543
  %v545 = vrcp.pop %v532
  %v546 = vmul.f32 1.0, %v545
  %v547 = vrcp.pop %v533
  %v548 = vmul.f32 1.0, %v547
  %v549 = vrcp.pop %v534
  %v550 = vmul.f32 1.0, %v549
  %559 = vrot.lane.b32.xlu0 %v536, 112
  %v560 = vpop.permute.xlu0 %559
  %561 = vrot.lane.b32.xlu0 %v538, 112
  %v562 = vpop.permute.xlu0 %561
  %563 = vrot.lane.b32.xlu0 %v540, 112
  %v564 = vpop.permute.xlu0 %563
  %565 = vrot.lane.b32.xlu0 %v542, 112
  %v566 = vpop.permute.xlu0 %565
  %567 = vrot.lane.b32.xlu0 %v544, 112
  %v568 = vpop.permute.xlu0 %567
  %569 = vrot.lane.b32.xlu0 %v546, 112
  %v570 = vpop.permute.xlu0 %569
  %571 = vrot.lane.b32.xlu0 %v548, 112
  %v572 = vpop.permute.xlu0 %571
  %573 = vrot.lane.b32.xlu0 %v550, 112
  %v574 = vpop.permute.xlu0 %573
  %v583 = vmul.f32 %v495, %v560
  %v584 = vmul.f32 %v496, %v562
  %v585 = vmul.f32 %v497, %v564
  %v586 = vmul.f32 %v498, %v566
  %v587 = vmul.f32 %v499, %v568
  %v588 = vmul.f32 %v500, %v570
  %v589 = vmul.f32 %v501, %v572
  %v590 = vmul.f32 %v502, %v574
  %v591 = vpack.c.bf16 %v584, %v583
  %v592 = vpack.c.bf16 %v586, %v585
  %v593 = vpack.c.bf16 %v588, %v587
  %v594 = vpack.c.bf16 %v590, %v589
  %v595 = vld [vmem:[%s5] sm:$0xf]
  %v596 = vld [vmem:[%s5 + $0x4] sm:$0xf]
  %v597 = vld [vmem:[%s6] sm:$0x1]
  %v599 = vlaneseq
  %v600 = vshrl.u32 %v599, 7
  %v601 = vsub.s32 0, %v600
  %v602 = vrot.slane %v597, %v601
  %v606 = vunpack.c.l.b16 %v595
  %v607 = vunpack.c.l.b16 %v596
  %v608 = vpack.c.b16 %v607, %v606
  %v611 = vsel %vm364, %v591, 0
  %v614 = vsel %vm364, %v592, 0
  %v617 = vsel %vm364, %v593, 0
  %v620 = vsel %vm364, %v594, 0
  %622 = vmatprep.subr.bf16.mxu0 0
  %623 = vmatpush1.bf16.msra.mxu0 0
  %624 = vmatprep.subr.bf16.mxu0 0
  %625 = vmatpush1.bf16.msra.mxu0 0
  %626 = vmatprep.subr.bf16.mxu0 0
  %627 = vmatpush1.bf16.msra.mxu0 0
  %628 = vmatprep.subr.bf16.mxu0 0
  %629 = vmatpush1.bf16.msra.mxu0 0
  %630 = vmatprep.subr.bf16.mxu0 0
  %631 = vmatpush1.bf16.msra.mxu0 0
  %632 = vmatprep.subr.bf16.mxu0 0
  %633 = vmatpush1.bf16.msra.mxu0 0
  %634 = vmatprep.subr.bf16.mxu0 0
  %635 = vmatpush1.bf16.msra.mxu0 0
  %636 = vmatprep.subr.bf16.mxu0 0
  %637 = vmatpush1.bf16.msra.mxu0 %v608
  %638 = vmatprep.subr.bf16.mxu0 0
  %639 = vmatpush2.bf16.msra.mxu0 0
  %640 = vmatprep.subr.bf16.mxu0 0
  %641 = vmatpush2.bf16.msra.mxu0 0
  %642 = vmatprep.subr.bf16.mxu0 0
  %643 = vmatpush2.bf16.msra.mxu0 0
  %644 = vmatprep.subr.bf16.mxu0 0
  %645 = vmatpush2.bf16.msra.mxu0 0
  %646 = vmatprep.subr.bf16.mxu0 0
  %647 = vmatpush2.bf16.msra.mxu0 0
  %648 = vmatprep.subr.bf16.mxu0 0
  %649 = vmatpush2.bf16.msra.mxu0 0
  %650 = vmatprep.subr.bf16.mxu0 0
  %651 = vmatpush2.bf16.msra.mxu0 0
  %652 = vmatprep.subr.bf16.mxu0 0
  %653 = vmatpush2.bf16.msra.mxu0 0
  %654 = vmatprep.mubr.bf16.mxu0 0
  %655 = vmatmul.mubr.bf16.gmra.mxu0 %v611
  %v656 = vpop.f32.mrf.mxu0
  %v657 = vadd.f32 %v602, %v656
  %v658 = vpop.f32.mrf.mxu0
  %v659 = vpop.f32.mrf.mxu0
  %v660 = vadd.f32 %v602, %v659
  %v661 = vpop.f32.mrf.mxu0
  %662 = vmatprep.mubr.bf16.mxu0 0
  %663 = vmatmul.mubr.bf16.gmra.mxu0 %v614
  %v664 = vpop.f32.mrf.mxu0
  %v665 = vadd.f32 %v602, %v664
  %v666 = vpop.f32.mrf.mxu0
  %v667 = vpop.f32.mrf.mxu0
  %v668 = vadd.f32 %v602, %v667
  %v669 = vpop.f32.mrf.mxu0
  %670 = vmatprep.mubr.bf16.mxu0 0
  %671 = vmatmul.mubr.bf16.gmra.mxu0 %v617
  %v672 = vpop.f32.mrf.mxu0
  %v673 = vadd.f32 %v602, %v672
  %v674 = vpop.f32.mrf.mxu0
  %v675 = vpop.f32.mrf.mxu0
  %v676 = vadd.f32 %v602, %v675
  %v677 = vpop.f32.mrf.mxu0
  %678 = vmatprep.mubr.bf16.mxu0 0
  %679 = vmatmul.mubr.bf16.gmra.mxu0 %v620
  %v680 = vpop.f32.mrf.mxu0
  %v681 = vadd.f32 %v602, %v680
  %v682 = vpop.f32.mrf.mxu0
  %v683 = vpop.f32.mrf.mxu0
  %v684 = vadd.f32 %v602, %v683
  %v685 = vpop.f32.mrf.mxu0
  %686 = vdwg.mxu0
  %v687 = vadd.f32 %v99, %v657
  %v688 = vadd.f32 %v102, %v660
  %v689 = vadd.f32 %v107, %v665
  %v690 = vadd.f32 %v110, %v668
  %v691 = vadd.f32 %v115, %v673
  %v692 = vadd.f32 %v118, %v676
  %v693 = vadd.f32 %v123, %v681
  %v694 = vadd.f32 %v126, %v684
  %vm695 = vcmp.ge.s32.totalorder %v226, 2
  %vm696 = vcmp.ge.s32.totalorder %v227, 2
  %vm697 = vcmp.ge.s32.totalorder %v228, 2
  %vm698 = vcmp.ge.s32.totalorder %v229, 2
  %vm699 = vcmp.ge.s32.totalorder %v230, 2
  %vm700 = vcmp.ge.s32.totalorder %v231, 2
  %vm701 = vcmp.ge.s32.totalorder %v232, 2
  %vm702 = vcmp.ge.s32.totalorder %v233, 2
  %v703 = vrot.slane %v657, 6
  %v704 = vrot.slane %v660, 6
  %v705 = vrot.slane %v665, 6
  %v706 = vrot.slane %v668, 6
  %v707 = vrot.slane %v673, 6
  %v708 = vrot.slane %v676, 6
  %v709 = vrot.slane %v681, 6
  %v710 = vrot.slane %v684, 6
  %vm711 = vcmp.lt.s32.totalorder %v130, 2
  %v712 = vsel %vm711, %v709, %v710
  %v713 = vsel %vm711, %v708, %v709
  %v714 = vsel %vm711, %v707, %v708
  %v715 = vsel %vm711, %v706, %v707
  %v716 = vsel %vm711, %v705, %v706
  %v717 = vsel %vm711, %v704, %v705
  %v718 = vsel %vm711, %v703, %v704
  %v719 = vsel %vm711, %v710, %v703
  %v720 = vsel %vm695, %v719, 0.0
  %v721 = vsel %vm696, %v718, 0.0
  %v722 = vsel %vm697, %v717, 0.0
  %v723 = vsel %vm698, %v716, 0.0
  %v724 = vsel %vm699, %v715, 0.0
  %v725 = vsel %vm700, %v714, 0.0
  %v726 = vsel %vm701, %v713, 0.0
  %v727 = vsel %vm702, %v712, 0.0
  %vm728 = vcmp.lt.s32.totalorder %v226, 30
  %vm729 = vcmp.lt.s32.totalorder %v227, 30
  %vm730 = vcmp.lt.s32.totalorder %v228, 30
  %vm731 = vcmp.lt.s32.totalorder %v229, 30
  %vm732 = vcmp.lt.s32.totalorder %v230, 30
  %vm733 = vcmp.lt.s32.totalorder %v231, 30
  %vm734 = vcmp.lt.s32.totalorder %v232, 30
  %vm735 = vcmp.lt.s32.totalorder %v233, 30
  %v736 = vrot.slane %v657, 2
  %v737 = vrot.slane %v660, 2
  %v738 = vrot.slane %v665, 2
  %v739 = vrot.slane %v668, 2
  %v740 = vrot.slane %v673, 2
  %v741 = vrot.slane %v676, 2
  %v742 = vrot.slane %v681, 2
  %v743 = vrot.slane %v684, 2
  %vm744 = vcmp.lt.s32.totalorder %v130, 6
  %v745 = vsel %vm744, %v742, %v743
  %v746 = vsel %vm744, %v741, %v742
  %v747 = vsel %vm744, %v740, %v741
  %v748 = vsel %vm744, %v739, %v740
  %v749 = vsel %vm744, %v738, %v739
  %v750 = vsel %vm744, %v737, %v738
  %v751 = vsel %vm744, %v736, %v737
  %v752 = vsel %vm744, %v743, %v736
  %v753 = vsel %vm728, %v751, 0.0
  %v754 = vsel %vm729, %v750, 0.0
  %v755 = vsel %vm730, %v749, 0.0
  %v756 = vsel %vm731, %v748, 0.0
  %v757 = vsel %vm732, %v747, 0.0
  %v758 = vsel %vm733, %v746, 0.0
  %v759 = vsel %vm734, %v745, 0.0
  %v760 = vsel %vm735, %v752, 0.0
  %769 = vrot.lane.b32.xlu0 %v657, 16
  %v770 = vpop.permute.xlu0 %769
  %771 = vrot.lane.b32.xlu0 %v660, 16
  %v772 = vpop.permute.xlu0 %771
  %773 = vrot.lane.b32.xlu0 %v665, 16
  %v774 = vpop.permute.xlu0 %773
  %775 = vrot.lane.b32.xlu0 %v668, 16
  %v776 = vpop.permute.xlu0 %775
  %777 = vrot.lane.b32.xlu0 %v673, 16
  %v778 = vpop.permute.xlu0 %777
  %779 = vrot.lane.b32.xlu0 %v676, 16
  %v780 = vpop.permute.xlu0 %779
  %781 = vrot.lane.b32.xlu0 %v681, 16
  %v782 = vpop.permute.xlu0 %781
  %783 = vrot.lane.b32.xlu0 %v684, 16
  %v784 = vpop.permute.xlu0 %783
  %801 = vrot.lane.b32.xlu0 %v753, 32
  %v802 = vpop.permute.xlu0 %801
  %803 = vrot.lane.b32.xlu0 %v754, 32
  %v804 = vpop.permute.xlu0 %803
  %805 = vrot.lane.b32.xlu0 %v755, 32
  %v806 = vpop.permute.xlu0 %805
  %807 = vrot.lane.b32.xlu0 %v756, 32
  %v808 = vpop.permute.xlu0 %807
  %809 = vrot.lane.b32.xlu0 %v757, 32
  %v810 = vpop.permute.xlu0 %809
  %811 = vrot.lane.b32.xlu0 %v758, 32
  %v812 = vpop.permute.xlu0 %811
  %813 = vrot.lane.b32.xlu0 %v759, 32
  %v814 = vpop.permute.xlu0 %813
  %815 = vrot.lane.b32.xlu0 %v760, 32
  %v816 = vpop.permute.xlu0 %815
  %v825 = vsel %vm364, %v720, %v770
  %v826 = vsel %vm364, %v721, %v772
  %v827 = vsel %vm364, %v722, %v774
  %v828 = vsel %vm364, %v723, %v776
  %v829 = vsel %vm364, %v724, %v778
  %v830 = vsel %vm364, %v725, %v780
  %v831 = vsel %vm364, %v726, %v782
  %v832 = vsel %vm364, %v727, %v784
  %v833 = vsel %vm373, %v825, %v802
  %v834 = vsel %vm373, %v826, %v804
  %v835 = vsel %vm373, %v827, %v806
  %v836 = vsel %vm373, %v828, %v808
  %v837 = vsel %vm373, %v829, %v810
  %v838 = vsel %vm373, %v830, %v812
  %v839 = vsel %vm373, %v831, %v814
  %v840 = vsel %vm373, %v832, %v816
  %v841 = vpack.c.bf16 %v834, %v833
  %v842 = vpack.c.bf16 %v836, %v835
  %v843 = vpack.c.bf16 %v838, %v837
  %v844 = vpack.c.bf16 %v840, %v839
  %s845 = scalar_lea.vmem %s3, 24
  %v846 = vld [vmem:[%s845] sm:$0xf]
  %v847 = vld [vmem:[%s845 + $0x4] sm:$0xf]
  %v848 = vld [vmem:[%s845 + $0x8] sm:$0xf]
  %v849 = vld [vmem:[%s845 + $0xc] sm:$0xf]
  %v850 = vld [vmem:[%s845 + $0x10] sm:$0xf]
  %v851 = vld [vmem:[%s845 + $0x14] sm:$0xf]
  %s852 = scalar_lea.vmem %s4, 1
  %v853 = vld [vmem:[%s852] sm:$0x1]
  %v855 = vlaneseq
  %v856 = vshrl.u32 %v855, 7
  %v857 = vsub.s32 0, %v856
  %v858 = vrot.slane %v853, %v857
  %v866 = vunpack.c.l.b16 %v846
  %v867 = vunpack.c.l.b16 %v847
  %v868 = vunpack.c.l.b16 %v848
  %v869 = vunpack.c.l.b16 %v849
  %v870 = vunpack.c.l.b16 %v850
  %v871 = vunpack.c.l.b16 %v851
  %v872 = vpack.c.b16 %v867, %v866
  %v873 = vpack.c.b16 %v869, %v868
  %v874 = vpack.c.b16 %v871, %v870
  %v879 = vsel %vm417, %v841, 0
  %v882 = vsel %vm417, %v842, 0
  %v885 = vsel %vm417, %v843, 0
  %v888 = vsel %vm417, %v844, 0
  %890 = vmatprep.subr.bf16.mxu0 0
  %891 = vmatpush1.bf16.msra.mxu0 0
  %892 = vmatprep.subr.bf16.mxu0 0
  %893 = vmatpush1.bf16.msra.mxu0 0
  %894 = vmatprep.subr.bf16.mxu0 0
  %895 = vmatpush1.bf16.msra.mxu0 0
  %896 = vmatprep.subr.bf16.mxu0 0
  %897 = vmatpush1.bf16.msra.mxu0 0
  %898 = vmatprep.subr.bf16.mxu0 0
  %899 = vmatpush1.bf16.msra.mxu0 0
  %900 = vmatprep.subr.bf16.mxu0 0
  %901 = vmatpush1.bf16.msra.mxu0 %v874
  %902 = vmatprep.subr.bf16.mxu0 0
  %903 = vmatpush1.bf16.msra.mxu0 %v873
  %904 = vmatprep.subr.bf16.mxu0 0
  %905 = vmatpush1.bf16.msra.mxu0 %v872
  %906 = vmatprep.subr.bf16.mxu0 0
  %907 = vmatpush2.bf16.msra.mxu0 0
  %908 = vmatprep.subr.bf16.mxu0 0
  %909 = vmatpush2.bf16.msra.mxu0 0
  %910 = vmatprep.subr.bf16.mxu0 0
  %911 = vmatpush2.bf16.msra.mxu0 0
  %912 = vmatprep.subr.bf16.mxu0 0
  %913 = vmatpush2.bf16.msra.mxu0 0
  %914 = vmatprep.subr.bf16.mxu0 0
  %915 = vmatpush2.bf16.msra.mxu0 0
  %916 = vmatprep.subr.bf16.mxu0 0
  %917 = vmatpush2.bf16.msra.mxu0 0
  %918 = vmatprep.subr.bf16.mxu0 0
  %919 = vmatpush2.bf16.msra.mxu0 0
  %920 = vmatprep.subr.bf16.mxu0 0
  %921 = vmatpush2.bf16.msra.mxu0 0
  %922 = vmatprep.mubr.bf16.mxu0 0
  %923 = vmatmul.mubr.bf16.gmra.mxu0 %v879
  %v924 = vpop.f32.mrf.mxu0
  %v925 = vadd.f32 %v858, %v924
  %v926 = vpop.f32.mrf.mxu0
  %v927 = vpop.f32.mrf.mxu0
  %v928 = vadd.f32 %v858, %v927
  %v929 = vpop.f32.mrf.mxu0
  %930 = vmatprep.mubr.bf16.mxu0 0
  %931 = vmatmul.mubr.bf16.gmra.mxu0 %v882
  %v932 = vpop.f32.mrf.mxu0
  %v933 = vadd.f32 %v858, %v932
  %v934 = vpop.f32.mrf.mxu0
  %v935 = vpop.f32.mrf.mxu0
  %v936 = vadd.f32 %v858, %v935
  %v937 = vpop.f32.mrf.mxu0
  %938 = vmatprep.mubr.bf16.mxu0 0
  %939 = vmatmul.mubr.bf16.gmra.mxu0 %v885
  %v940 = vpop.f32.mrf.mxu0
  %v941 = vadd.f32 %v858, %v940
  %v942 = vpop.f32.mrf.mxu0
  %v943 = vpop.f32.mrf.mxu0
  %v944 = vadd.f32 %v858, %v943
  %v945 = vpop.f32.mrf.mxu0
  %946 = vmatprep.mubr.bf16.mxu0 0
  %947 = vmatmul.mubr.bf16.gmra.mxu0 %v888
  %v948 = vpop.f32.mrf.mxu0
  %v949 = vadd.f32 %v858, %v948
  %v950 = vpop.f32.mrf.mxu0
  %v951 = vpop.f32.mrf.mxu0
  %v952 = vadd.f32 %v858, %v951
  %v953 = vpop.f32.mrf.mxu0
  %954 = vdwg.mxu0
  %v955 = vtanh.pop %v925
  %v956 = vtanh.pop %v928
  %v957 = vtanh.pop %v933
  %v958 = vtanh.pop %v936
  %v959 = vtanh.pop %v941
  %v960 = vtanh.pop %v944
  %v961 = vtanh.pop %v949
  %v962 = vtanh.pop %v952
  %v963 = vxor.u32 %v925, 2147483648
  %v964 = vxor.u32 %v928, 2147483648
  %v965 = vxor.u32 %v933, 2147483648
  %v966 = vxor.u32 %v936, 2147483648
  %v967 = vxor.u32 %v941, 2147483648
  %v968 = vxor.u32 %v944, 2147483648
  %v969 = vxor.u32 %v949, 2147483648
  %v970 = vxor.u32 %v952, 2147483648
  %v971 = vmul.f32 %v963, 1.442695
  %v972 = vpow.pop %v971
  %v973 = vmul.f32 %v964, 1.442695
  %v974 = vpow.pop %v973
  %v975 = vmul.f32 %v965, 1.442695
  %v976 = vpow.pop %v975
  %v977 = vmul.f32 %v966, 1.442695
  %v978 = vpow.pop %v977
  %v979 = vmul.f32 %v967, 1.442695
  %v980 = vpow.pop %v979
  %v981 = vmul.f32 %v968, 1.442695
  %v982 = vpow.pop %v981
  %v983 = vmul.f32 %v969, 1.442695
  %v984 = vpow.pop %v983
  %v985 = vmul.f32 %v970, 1.442695
  %v986 = vpow.pop %v985
  %v987 = vadd.f32 %v972, 1.0
  %v988 = vadd.f32 %v974, 1.0
  %v989 = vadd.f32 %v976, 1.0
  %v990 = vadd.f32 %v978, 1.0
  %v991 = vadd.f32 %v980, 1.0
  %v992 = vadd.f32 %v982, 1.0
  %v993 = vadd.f32 %v984, 1.0
  %v994 = vadd.f32 %v986, 1.0
  %v995 = vrcp.pop %v987
  %v996 = vmul.f32 1.0, %v995
  %v997 = vrcp.pop %v988
  %v998 = vmul.f32 1.0, %v997
  %v999 = vrcp.pop %v989
  %v1000 = vmul.f32 1.0, %v999
  %v1001 = vrcp.pop %v990
  %v1002 = vmul.f32 1.0, %v1001
  %v1003 = vrcp.pop %v991
  %v1004 = vmul.f32 1.0, %v1003
  %v1005 = vrcp.pop %v992
  %v1006 = vmul.f32 1.0, %v1005
  %v1007 = vrcp.pop %v993
  %v1008 = vmul.f32 1.0, %v1007
  %v1009 = vrcp.pop %v994
  %v1010 = vmul.f32 1.0, %v1009
  %1019 = vrot.lane.b32.xlu0 %v996, 112
  %v1020 = vpop.permute.xlu0 %1019
  %1021 = vrot.lane.b32.xlu0 %v998, 112
  %v1022 = vpop.permute.xlu0 %1021
  %1023 = vrot.lane.b32.xlu0 %v1000, 112
  %v1024 = vpop.permute.xlu0 %1023
  %1025 = vrot.lane.b32.xlu0 %v1002, 112
  %v1026 = vpop.permute.xlu0 %1025
  %1027 = vrot.lane.b32.xlu0 %v1004, 112
  %v1028 = vpop.permute.xlu0 %1027
  %1029 = vrot.lane.b32.xlu0 %v1006, 112
  %v1030 = vpop.permute.xlu0 %1029
  %1031 = vrot.lane.b32.xlu0 %v1008, 112
  %v1032 = vpop.permute.xlu0 %1031
  %1033 = vrot.lane.b32.xlu0 %v1010, 112
  %v1034 = vpop.permute.xlu0 %1033
  %v1043 = vmul.f32 %v955, %v1020
  %v1044 = vmul.f32 %v956, %v1022
  %v1045 = vmul.f32 %v957, %v1024
  %v1046 = vmul.f32 %v958, %v1026
  %v1047 = vmul.f32 %v959, %v1028
  %v1048 = vmul.f32 %v960, %v1030
  %v1049 = vmul.f32 %v961, %v1032
  %v1050 = vmul.f32 %v962, %v1034
  %v1051 = vpack.c.bf16 %v1044, %v1043
  %v1052 = vpack.c.bf16 %v1046, %v1045
  %v1053 = vpack.c.bf16 %v1048, %v1047
  %v1054 = vpack.c.bf16 %v1050, %v1049
  %s1055 = scalar_lea.vmem %s5, 8
  %v1056 = vld [vmem:[%s1055] sm:$0xf]
  %v1057 = vld [vmem:[%s1055 + $0x4] sm:$0xf]
  %s1058 = scalar_lea.vmem %s6, 1
  %v1059 = vld [vmem:[%s1058] sm:$0x1]
  %v1061 = vlaneseq
  %v1062 = vshrl.u32 %v1061, 7
  %v1063 = vsub.s32 0, %v1062
  %v1064 = vrot.slane %v1059, %v1063
  %v1068 = vunpack.c.l.b16 %v1056
  %v1069 = vunpack.c.l.b16 %v1057
  %v1070 = vpack.c.b16 %v1069, %v1068
  %v1073 = vsel %vm364, %v1051, 0
  %v1076 = vsel %vm364, %v1052, 0
  %v1079 = vsel %vm364, %v1053, 0
  %v1082 = vsel %vm364, %v1054, 0
  %1084 = vmatprep.subr.bf16.mxu0 0
  %1085 = vmatpush1.bf16.msra.mxu0 0
  %1086 = vmatprep.subr.bf16.mxu0 0
  %1087 = vmatpush1.bf16.msra.mxu0 0
  %1088 = vmatprep.subr.bf16.mxu0 0
  %1089 = vmatpush1.bf16.msra.mxu0 0
  %1090 = vmatprep.subr.bf16.mxu0 0
  %1091 = vmatpush1.bf16.msra.mxu0 0
  %1092 = vmatprep.subr.bf16.mxu0 0
  %1093 = vmatpush1.bf16.msra.mxu0 0
  %1094 = vmatprep.subr.bf16.mxu0 0
  %1095 = vmatpush1.bf16.msra.mxu0 0
  %1096 = vmatprep.subr.bf16.mxu0 0
  %1097 = vmatpush1.bf16.msra.mxu0 0
  %1098 = vmatprep.subr.bf16.mxu0 0
  %1099 = vmatpush1.bf16.msra.mxu0 %v1070
  %1100 = vmatprep.subr.bf16.mxu0 0
  %1101 = vmatpush2.bf16.msra.mxu0 0
  %1102 = vmatprep.subr.bf16.mxu0 0
  %1103 = vmatpush2.bf16.msra.mxu0 0
  %1104 = vmatprep.subr.bf16.mxu0 0
  %1105 = vmatpush2.bf16.msra.mxu0 0
  %1106 = vmatprep.subr.bf16.mxu0 0
  %1107 = vmatpush2.bf16.msra.mxu0 0
  %1108 = vmatprep.subr.bf16.mxu0 0
  %1109 = vmatpush2.bf16.msra.mxu0 0
  %1110 = vmatprep.subr.bf16.mxu0 0
  %1111 = vmatpush2.bf16.msra.mxu0 0
  %1112 = vmatprep.subr.bf16.mxu0 0
  %1113 = vmatpush2.bf16.msra.mxu0 0
  %1114 = vmatprep.subr.bf16.mxu0 0
  %1115 = vmatpush2.bf16.msra.mxu0 0
  %1116 = vmatprep.mubr.bf16.mxu0 0
  %1117 = vmatmul.mubr.bf16.gmra.mxu0 %v1073
  %v1118 = vpop.f32.mrf.mxu0
  %v1119 = vadd.f32 %v1064, %v1118
  %v1120 = vpop.f32.mrf.mxu0
  %v1121 = vpop.f32.mrf.mxu0
  %v1122 = vadd.f32 %v1064, %v1121
  %v1123 = vpop.f32.mrf.mxu0
  %1124 = vmatprep.mubr.bf16.mxu0 0
  %1125 = vmatmul.mubr.bf16.gmra.mxu0 %v1076
  %v1126 = vpop.f32.mrf.mxu0
  %v1127 = vadd.f32 %v1064, %v1126
  %v1128 = vpop.f32.mrf.mxu0
  %v1129 = vpop.f32.mrf.mxu0
  %v1130 = vadd.f32 %v1064, %v1129
  %v1131 = vpop.f32.mrf.mxu0
  %1132 = vmatprep.mubr.bf16.mxu0 0
  %1133 = vmatmul.mubr.bf16.gmra.mxu0 %v1079
  %v1134 = vpop.f32.mrf.mxu0
  %v1135 = vadd.f32 %v1064, %v1134
  %v1136 = vpop.f32.mrf.mxu0
  %v1137 = vpop.f32.mrf.mxu0
  %v1138 = vadd.f32 %v1064, %v1137
  %v1139 = vpop.f32.mrf.mxu0
  %1140 = vmatprep.mubr.bf16.mxu0 0
  %1141 = vmatmul.mubr.bf16.gmra.mxu0 %v1082
  %v1142 = vpop.f32.mrf.mxu0
  %v1143 = vadd.f32 %v1064, %v1142
  %v1144 = vpop.f32.mrf.mxu0
  %v1145 = vpop.f32.mrf.mxu0
  %v1146 = vadd.f32 %v1064, %v1145
  %v1147 = vpop.f32.mrf.mxu0
  %1148 = vdwg.mxu0
  %v1149 = vadd.f32 %v687, %v1119
  %v1150 = vadd.f32 %v688, %v1122
  %v1151 = vadd.f32 %v689, %v1127
  %v1152 = vadd.f32 %v690, %v1130
  %v1153 = vadd.f32 %v691, %v1135
  %v1154 = vadd.f32 %v692, %v1138
  %v1155 = vadd.f32 %v693, %v1143
  %v1156 = vadd.f32 %v694, %v1146
  %vm1157 = vcmp.ge.s32.totalorder %v226, 4
  %vm1158 = vcmp.ge.s32.totalorder %v227, 4
  %vm1159 = vcmp.ge.s32.totalorder %v228, 4
  %vm1160 = vcmp.ge.s32.totalorder %v229, 4
  %vm1161 = vcmp.ge.s32.totalorder %v230, 4
  %vm1162 = vcmp.ge.s32.totalorder %v231, 4
  %vm1163 = vcmp.ge.s32.totalorder %v232, 4
  %vm1164 = vcmp.ge.s32.totalorder %v233, 4
  %v1165 = vrot.slane %v1119, 4
  %v1166 = vrot.slane %v1122, 4
  %v1167 = vrot.slane %v1127, 4
  %v1168 = vrot.slane %v1130, 4
  %v1169 = vrot.slane %v1135, 4
  %v1170 = vrot.slane %v1138, 4
  %v1171 = vrot.slane %v1143, 4
  %v1172 = vrot.slane %v1146, 4
  %vm1173 = vcmp.lt.s32.totalorder %v130, 4
  %v1174 = vsel %vm1173, %v1171, %v1172
  %v1175 = vsel %vm1173, %v1170, %v1171
  %v1176 = vsel %vm1173, %v1169, %v1170
  %v1177 = vsel %vm1173, %v1168, %v1169
  %v1178 = vsel %vm1173, %v1167, %v1168
  %v1179 = vsel %vm1173, %v1166, %v1167
  %v1180 = vsel %vm1173, %v1165, %v1166
  %v1181 = vsel %vm1173, %v1172, %v1165
  %v1182 = vsel %vm1157, %v1181, 0.0
  %v1183 = vsel %vm1158, %v1180, 0.0
  %v1184 = vsel %vm1159, %v1179, 0.0
  %v1185 = vsel %vm1160, %v1178, 0.0
  %v1186 = vsel %vm1161, %v1177, 0.0
  %v1187 = vsel %vm1162, %v1176, 0.0
  %v1188 = vsel %vm1163, %v1175, 0.0
  %v1189 = vsel %vm1164, %v1174, 0.0
  %vm1190 = vcmp.lt.s32.totalorder %v226, 28
  %vm1191 = vcmp.lt.s32.totalorder %v227, 28
  %vm1192 = vcmp.lt.s32.totalorder %v228, 28
  %vm1193 = vcmp.lt.s32.totalorder %v229, 28
  %vm1194 = vcmp.lt.s32.totalorder %v230, 28
  %vm1195 = vcmp.lt.s32.totalorder %v231, 28
  %vm1196 = vcmp.lt.s32.totalorder %v232, 28
  %vm1197 = vcmp.lt.s32.totalorder %v233, 28
  %v1198 = vsel %vm1190, %v1180, 0.0
  %v1199 = vsel %vm1191, %v1179, 0.0
  %v1200 = vsel %vm1192, %v1178, 0.0
  %v1201 = vsel %vm1193, %v1177, 0.0
  %v1202 = vsel %vm1194, %v1176, 0.0
  %v1203 = vsel %vm1195, %v1175, 0.0
  %v1204 = vsel %vm1196, %v1174, 0.0
  %v1205 = vsel %vm1197, %v1181, 0.0
  %1214 = vrot.lane.b32.xlu0 %v1119, 16
  %v1215 = vpop.permute.xlu0 %1214
  %1216 = vrot.lane.b32.xlu0 %v1122, 16
  %v1217 = vpop.permute.xlu0 %1216
  %1218 = vrot.lane.b32.xlu0 %v1127, 16
  %v1219 = vpop.permute.xlu0 %1218
  %1220 = vrot.lane.b32.xlu0 %v1130, 16
  %v1221 = vpop.permute.xlu0 %1220
  %1222 = vrot.lane.b32.xlu0 %v1135, 16
  %v1223 = vpop.permute.xlu0 %1222
  %1224 = vrot.lane.b32.xlu0 %v1138, 16
  %v1225 = vpop.permute.xlu0 %1224
  %1226 = vrot.lane.b32.xlu0 %v1143, 16
  %v1227 = vpop.permute.xlu0 %1226
  %1228 = vrot.lane.b32.xlu0 %v1146, 16
  %v1229 = vpop.permute.xlu0 %1228
  %1246 = vrot.lane.b32.xlu0 %v1198, 32
  %v1247 = vpop.permute.xlu0 %1246
  %1248 = vrot.lane.b32.xlu0 %v1199, 32
  %v1249 = vpop.permute.xlu0 %1248
  %1250 = vrot.lane.b32.xlu0 %v1200, 32
  %v1251 = vpop.permute.xlu0 %1250
  %1252 = vrot.lane.b32.xlu0 %v1201, 32
  %v1253 = vpop.permute.xlu0 %1252
  %1254 = vrot.lane.b32.xlu0 %v1202, 32
  %v1255 = vpop.permute.xlu0 %1254
  %1256 = vrot.lane.b32.xlu0 %v1203, 32
  %v1257 = vpop.permute.xlu0 %1256
  %1258 = vrot.lane.b32.xlu0 %v1204, 32
  %v1259 = vpop.permute.xlu0 %1258
  %1260 = vrot.lane.b32.xlu0 %v1205, 32
  %v1261 = vpop.permute.xlu0 %1260
  %v1270 = vsel %vm364, %v1182, %v1215
  %v1271 = vsel %vm364, %v1183, %v1217
  %v1272 = vsel %vm364, %v1184, %v1219
  %v1273 = vsel %vm364, %v1185, %v1221
  %v1274 = vsel %vm364, %v1186, %v1223
  %v1275 = vsel %vm364, %v1187, %v1225
  %v1276 = vsel %vm364, %v1188, %v1227
  %v1277 = vsel %vm364, %v1189, %v1229
  %v1278 = vsel %vm373, %v1270, %v1247
  %v1279 = vsel %vm373, %v1271, %v1249
  %v1280 = vsel %vm373, %v1272, %v1251
  %v1281 = vsel %vm373, %v1273, %v1253
  %v1282 = vsel %vm373, %v1274, %v1255
  %v1283 = vsel %vm373, %v1275, %v1257
  %v1284 = vsel %vm373, %v1276, %v1259
  %v1285 = vsel %vm373, %v1277, %v1261
  %v1286 = vpack.c.bf16 %v1279, %v1278
  %v1287 = vpack.c.bf16 %v1281, %v1280
  %v1288 = vpack.c.bf16 %v1283, %v1282
  %v1289 = vpack.c.bf16 %v1285, %v1284
  %s1290 = scalar_lea.vmem %s3, 48
  %v1291 = vld [vmem:[%s1290] sm:$0xf]
  %v1292 = vld [vmem:[%s1290 + $0x4] sm:$0xf]
  %v1293 = vld [vmem:[%s1290 + $0x8] sm:$0xf]
  %v1294 = vld [vmem:[%s1290 + $0xc] sm:$0xf]
  %v1295 = vld [vmem:[%s1290 + $0x10] sm:$0xf]
  %v1296 = vld [vmem:[%s1290 + $0x14] sm:$0xf]
  %s1297 = scalar_lea.vmem %s4, 2
  %v1298 = vld [vmem:[%s1297] sm:$0x1]
  %v1300 = vlaneseq
  %v1301 = vshrl.u32 %v1300, 7
  %v1302 = vsub.s32 0, %v1301
  %v1303 = vrot.slane %v1298, %v1302
  %v1311 = vunpack.c.l.b16 %v1291
  %v1312 = vunpack.c.l.b16 %v1292
  %v1313 = vunpack.c.l.b16 %v1293
  %v1314 = vunpack.c.l.b16 %v1294
  %v1315 = vunpack.c.l.b16 %v1295
  %v1316 = vunpack.c.l.b16 %v1296
  %v1317 = vpack.c.b16 %v1312, %v1311
  %v1318 = vpack.c.b16 %v1314, %v1313
  %v1319 = vpack.c.b16 %v1316, %v1315
  %v1324 = vsel %vm417, %v1286, 0
  %v1327 = vsel %vm417, %v1287, 0
  %v1330 = vsel %vm417, %v1288, 0
  %v1333 = vsel %vm417, %v1289, 0
  %1335 = vmatprep.subr.bf16.mxu0 0
  %1336 = vmatpush1.bf16.msra.mxu0 0
  %1337 = vmatprep.subr.bf16.mxu0 0
  %1338 = vmatpush1.bf16.msra.mxu0 0
  %1339 = vmatprep.subr.bf16.mxu0 0
  %1340 = vmatpush1.bf16.msra.mxu0 0
  %1341 = vmatprep.subr.bf16.mxu0 0
  %1342 = vmatpush1.bf16.msra.mxu0 0
  %1343 = vmatprep.subr.bf16.mxu0 0
  %1344 = vmatpush1.bf16.msra.mxu0 0
  %1345 = vmatprep.subr.bf16.mxu0 0
  %1346 = vmatpush1.bf16.msra.mxu0 %v1319
  %1347 = vmatprep.subr.bf16.mxu0 0
  %1348 = vmatpush1.bf16.msra.mxu0 %v1318
  %1349 = vmatprep.subr.bf16.mxu0 0
  %1350 = vmatpush1.bf16.msra.mxu0 %v1317
  %1351 = vmatprep.subr.bf16.mxu0 0
  %1352 = vmatpush2.bf16.msra.mxu0 0
  %1353 = vmatprep.subr.bf16.mxu0 0
  %1354 = vmatpush2.bf16.msra.mxu0 0
  %1355 = vmatprep.subr.bf16.mxu0 0
  %1356 = vmatpush2.bf16.msra.mxu0 0
  %1357 = vmatprep.subr.bf16.mxu0 0
  %1358 = vmatpush2.bf16.msra.mxu0 0
  %1359 = vmatprep.subr.bf16.mxu0 0
  %1360 = vmatpush2.bf16.msra.mxu0 0
  %1361 = vmatprep.subr.bf16.mxu0 0
  %1362 = vmatpush2.bf16.msra.mxu0 0
  %1363 = vmatprep.subr.bf16.mxu0 0
  %1364 = vmatpush2.bf16.msra.mxu0 0
  %1365 = vmatprep.subr.bf16.mxu0 0
  %1366 = vmatpush2.bf16.msra.mxu0 0
  %1367 = vmatprep.mubr.bf16.mxu0 0
  %1368 = vmatmul.mubr.bf16.gmra.mxu0 %v1324
  %v1369 = vpop.f32.mrf.mxu0
  %v1370 = vadd.f32 %v1303, %v1369
  %v1371 = vpop.f32.mrf.mxu0
  %v1372 = vpop.f32.mrf.mxu0
  %v1373 = vadd.f32 %v1303, %v1372
  %v1374 = vpop.f32.mrf.mxu0
  %1375 = vmatprep.mubr.bf16.mxu0 0
  %1376 = vmatmul.mubr.bf16.gmra.mxu0 %v1327
  %v1377 = vpop.f32.mrf.mxu0
  %v1378 = vadd.f32 %v1303, %v1377
  %v1379 = vpop.f32.mrf.mxu0
  %v1380 = vpop.f32.mrf.mxu0
  %v1381 = vadd.f32 %v1303, %v1380
  %v1382 = vpop.f32.mrf.mxu0
  %1383 = vmatprep.mubr.bf16.mxu0 0
  %1384 = vmatmul.mubr.bf16.gmra.mxu0 %v1330
  %v1385 = vpop.f32.mrf.mxu0
  %v1386 = vadd.f32 %v1303, %v1385
  %v1387 = vpop.f32.mrf.mxu0
  %v1388 = vpop.f32.mrf.mxu0
  %v1389 = vadd.f32 %v1303, %v1388
  %v1390 = vpop.f32.mrf.mxu0
  %1391 = vmatprep.mubr.bf16.mxu0 0
  %1392 = vmatmul.mubr.bf16.gmra.mxu0 %v1333
  %v1393 = vpop.f32.mrf.mxu0
  %v1394 = vadd.f32 %v1303, %v1393
  %v1395 = vpop.f32.mrf.mxu0
  %v1396 = vpop.f32.mrf.mxu0
  %v1397 = vadd.f32 %v1303, %v1396
  %v1398 = vpop.f32.mrf.mxu0
  %1399 = vdwg.mxu0
  %v1400 = vtanh.pop %v1370
  %v1401 = vtanh.pop %v1373
  %v1402 = vtanh.pop %v1378
  %v1403 = vtanh.pop %v1381
  %v1404 = vtanh.pop %v1386
  %v1405 = vtanh.pop %v1389
  %v1406 = vtanh.pop %v1394
  %v1407 = vtanh.pop %v1397
  %v1408 = vxor.u32 %v1370, 2147483648
  %v1409 = vxor.u32 %v1373, 2147483648
  %v1410 = vxor.u32 %v1378, 2147483648
  %v1411 = vxor.u32 %v1381, 2147483648
  %v1412 = vxor.u32 %v1386, 2147483648
  %v1413 = vxor.u32 %v1389, 2147483648
  %v1414 = vxor.u32 %v1394, 2147483648
  %v1415 = vxor.u32 %v1397, 2147483648
  %v1416 = vmul.f32 %v1408, 1.442695
  %v1417 = vpow.pop %v1416
  %v1418 = vmul.f32 %v1409, 1.442695
  %v1419 = vpow.pop %v1418
  %v1420 = vmul.f32 %v1410, 1.442695
  %v1421 = vpow.pop %v1420
  %v1422 = vmul.f32 %v1411, 1.442695
  %v1423 = vpow.pop %v1422
  %v1424 = vmul.f32 %v1412, 1.442695
  %v1425 = vpow.pop %v1424
  %v1426 = vmul.f32 %v1413, 1.442695
  %v1427 = vpow.pop %v1426
  %v1428 = vmul.f32 %v1414, 1.442695
  %v1429 = vpow.pop %v1428
  %v1430 = vmul.f32 %v1415, 1.442695
  %v1431 = vpow.pop %v1430
  %v1432 = vadd.f32 %v1417, 1.0
  %v1433 = vadd.f32 %v1419, 1.0
  %v1434 = vadd.f32 %v1421, 1.0
  %v1435 = vadd.f32 %v1423, 1.0
  %v1436 = vadd.f32 %v1425, 1.0
  %v1437 = vadd.f32 %v1427, 1.0
  %v1438 = vadd.f32 %v1429, 1.0
  %v1439 = vadd.f32 %v1431, 1.0
  %v1440 = vrcp.pop %v1432
  %v1441 = vmul.f32 1.0, %v1440
  %v1442 = vrcp.pop %v1433
  %v1443 = vmul.f32 1.0, %v1442
  %v1444 = vrcp.pop %v1434
  %v1445 = vmul.f32 1.0, %v1444
  %v1446 = vrcp.pop %v1435
  %v1447 = vmul.f32 1.0, %v1446
  %v1448 = vrcp.pop %v1436
  %v1449 = vmul.f32 1.0, %v1448
  %v1450 = vrcp.pop %v1437
  %v1451 = vmul.f32 1.0, %v1450
  %v1452 = vrcp.pop %v1438
  %v1453 = vmul.f32 1.0, %v1452
  %v1454 = vrcp.pop %v1439
  %v1455 = vmul.f32 1.0, %v1454
  %1464 = vrot.lane.b32.xlu0 %v1441, 112
  %v1465 = vpop.permute.xlu0 %1464
  %1466 = vrot.lane.b32.xlu0 %v1443, 112
  %v1467 = vpop.permute.xlu0 %1466
  %1468 = vrot.lane.b32.xlu0 %v1445, 112
  %v1469 = vpop.permute.xlu0 %1468
  %1470 = vrot.lane.b32.xlu0 %v1447, 112
  %v1471 = vpop.permute.xlu0 %1470
  %1472 = vrot.lane.b32.xlu0 %v1449, 112
  %v1473 = vpop.permute.xlu0 %1472
  %1474 = vrot.lane.b32.xlu0 %v1451, 112
  %v1475 = vpop.permute.xlu0 %1474
  %1476 = vrot.lane.b32.xlu0 %v1453, 112
  %v1477 = vpop.permute.xlu0 %1476
  %1478 = vrot.lane.b32.xlu0 %v1455, 112
  %v1479 = vpop.permute.xlu0 %1478
  %v1488 = vmul.f32 %v1400, %v1465
  %v1489 = vmul.f32 %v1401, %v1467
  %v1490 = vmul.f32 %v1402, %v1469
  %v1491 = vmul.f32 %v1403, %v1471
  %v1492 = vmul.f32 %v1404, %v1473
  %v1493 = vmul.f32 %v1405, %v1475
  %v1494 = vmul.f32 %v1406, %v1477
  %v1495 = vmul.f32 %v1407, %v1479
  %v1496 = vpack.c.bf16 %v1489, %v1488
  %v1497 = vpack.c.bf16 %v1491, %v1490
  %v1498 = vpack.c.bf16 %v1493, %v1492
  %v1499 = vpack.c.bf16 %v1495, %v1494
  %s1500 = scalar_lea.vmem %s5, 16
  %v1501 = vld [vmem:[%s1500] sm:$0xf]
  %v1502 = vld [vmem:[%s1500 + $0x4] sm:$0xf]
  %s1503 = scalar_lea.vmem %s6, 2
  %v1504 = vld [vmem:[%s1503] sm:$0x1]
  %v1506 = vlaneseq
  %v1507 = vshrl.u32 %v1506, 7
  %v1508 = vsub.s32 0, %v1507
  %v1509 = vrot.slane %v1504, %v1508
  %v1513 = vunpack.c.l.b16 %v1501
  %v1514 = vunpack.c.l.b16 %v1502
  %v1515 = vpack.c.b16 %v1514, %v1513
  %v1518 = vsel %vm364, %v1496, 0
  %v1521 = vsel %vm364, %v1497, 0
  %v1524 = vsel %vm364, %v1498, 0
  %v1527 = vsel %vm364, %v1499, 0
  %1529 = vmatprep.subr.bf16.mxu0 0
  %1530 = vmatpush1.bf16.msra.mxu0 0
  %1531 = vmatprep.subr.bf16.mxu0 0
  %1532 = vmatpush1.bf16.msra.mxu0 0
  %1533 = vmatprep.subr.bf16.mxu0 0
  %1534 = vmatpush1.bf16.msra.mxu0 0
  %1535 = vmatprep.subr.bf16.mxu0 0
  %1536 = vmatpush1.bf16.msra.mxu0 0
  %1537 = vmatprep.subr.bf16.mxu0 0
  %1538 = vmatpush1.bf16.msra.mxu0 0
  %1539 = vmatprep.subr.bf16.mxu0 0
  %1540 = vmatpush1.bf16.msra.mxu0 0
  %1541 = vmatprep.subr.bf16.mxu0 0
  %1542 = vmatpush1.bf16.msra.mxu0 0
  %1543 = vmatprep.subr.bf16.mxu0 0
  %1544 = vmatpush1.bf16.msra.mxu0 %v1515
  %1545 = vmatprep.subr.bf16.mxu0 0
  %1546 = vmatpush2.bf16.msra.mxu0 0
  %1547 = vmatprep.subr.bf16.mxu0 0
  %1548 = vmatpush2.bf16.msra.mxu0 0
  %1549 = vmatprep.subr.bf16.mxu0 0
  %1550 = vmatpush2.bf16.msra.mxu0 0
  %1551 = vmatprep.subr.bf16.mxu0 0
  %1552 = vmatpush2.bf16.msra.mxu0 0
  %1553 = vmatprep.subr.bf16.mxu0 0
  %1554 = vmatpush2.bf16.msra.mxu0 0
  %1555 = vmatprep.subr.bf16.mxu0 0
  %1556 = vmatpush2.bf16.msra.mxu0 0
  %1557 = vmatprep.subr.bf16.mxu0 0
  %1558 = vmatpush2.bf16.msra.mxu0 0
  %1559 = vmatprep.subr.bf16.mxu0 0
  %1560 = vmatpush2.bf16.msra.mxu0 0
  %1561 = vmatprep.mubr.bf16.mxu0 0
  %1562 = vmatmul.mubr.bf16.gmra.mxu0 %v1518
  %v1563 = vpop.f32.mrf.mxu0
  %v1564 = vadd.f32 %v1509, %v1563
  %v1565 = vpop.f32.mrf.mxu0
  %v1566 = vpop.f32.mrf.mxu0
  %v1567 = vadd.f32 %v1509, %v1566
  %v1568 = vpop.f32.mrf.mxu0
  %1569 = vmatprep.mubr.bf16.mxu0 0
  %1570 = vmatmul.mubr.bf16.gmra.mxu0 %v1521
  %v1571 = vpop.f32.mrf.mxu0
  %v1572 = vadd.f32 %v1509, %v1571
  %v1573 = vpop.f32.mrf.mxu0
  %v1574 = vpop.f32.mrf.mxu0
  %v1575 = vadd.f32 %v1509, %v1574
  %v1576 = vpop.f32.mrf.mxu0
  %1577 = vmatprep.mubr.bf16.mxu0 0
  %1578 = vmatmul.mubr.bf16.gmra.mxu0 %v1524
  %v1579 = vpop.f32.mrf.mxu0
  %v1580 = vadd.f32 %v1509, %v1579
  %v1581 = vpop.f32.mrf.mxu0
  %v1582 = vpop.f32.mrf.mxu0
  %v1583 = vadd.f32 %v1509, %v1582
  %v1584 = vpop.f32.mrf.mxu0
  %1585 = vmatprep.mubr.bf16.mxu0 0
  %1586 = vmatmul.mubr.bf16.gmra.mxu0 %v1527
  %v1587 = vpop.f32.mrf.mxu0
  %v1588 = vadd.f32 %v1509, %v1587
  %v1589 = vpop.f32.mrf.mxu0
  %v1590 = vpop.f32.mrf.mxu0
  %v1591 = vadd.f32 %v1509, %v1590
  %v1592 = vpop.f32.mrf.mxu0
  %1593 = vdwg.mxu0
  %v1594 = vadd.f32 %v1149, %v1564
  %v1595 = vadd.f32 %v1150, %v1567
  %v1596 = vadd.f32 %v1151, %v1572
  %v1597 = vadd.f32 %v1152, %v1575
  %v1598 = vadd.f32 %v1153, %v1580
  %v1599 = vadd.f32 %v1154, %v1583
  %v1600 = vadd.f32 %v1155, %v1588
  %v1601 = vadd.f32 %v1156, %v1591
  %1602 = vst.msk [vmem:[%s7] sm:$0xff] %vm364, %v1594
  %1603 = vst.msk [vmem:[%s7 + $0x8] sm:$0xff] %vm364, %v1595
  %1604 = vst.msk [vmem:[%s7 + $0x10] sm:$0xff] %vm364, %v1596
  %1605 = vst.msk [vmem:[%s7 + $0x18] sm:$0xff] %vm364, %v1597
  %1606 = vst.msk [vmem:[%s7 + $0x20] sm:$0xff] %vm364, %v1598
  %1607 = vst.msk [vmem:[%s7 + $0x28] sm:$0xff] %vm364, %v1599
  %1608 = vst.msk [vmem:[%s7 + $0x30] sm:$0xff] %vm364, %v1600
  %1609 = vst.msk [vmem:[%s7 + $0x38] sm:$0xff] %vm364, %v1601
  // Predicated region
  $region30: #{tpu_custom_call.1} parent=0 // pred_check
    _
  $region31: #{tpu_custom_call.1} parent=0 // pred_check_branch
    %1611 = sbr.rel (0) target = $region33
  $region32: #{tpu_custom_call.1} parent=0 // pred_region
    _
  $region33: #{tpu_custom_call.1} parent=0 // pred_fallthru
    _
  // Predicated region
  $region34: #{tpu_custom_call.1} parent=0 // pred_check
    _
  $region35: #{tpu_custom_call.1} parent=0 // pred_check_branch
    %1613 = sbr.rel (0) target = $region37
  $region36: #{tpu_custom_call.1} parent=0 // pred_region
    _
  $region37: #{tpu_custom_call.1} parent=0 // pred_fallthru
    _

</llo_original>
